<compile_context>
chip_gen: v5e
topology: v5e:2x2
jax: 0.10.0
libtpu: 0.0.40
codegen_flags: <defaults>
</compile_context>

<pallas_src>
import functools

import jax
import jax.numpy as jnp
from jax import lax
from jax.experimental import pallas as pl
from jax.experimental.pallas import tpu as pltpu


def _round_up(a, m):
    return ((a + m - 1) // m) * m


def _padded_width(H, W):
    """Smallest Wp >= W+6 such that H*Wp is a multiple of 128 (if reachable)."""
    wp = W + 6
    extra = 0
    while (H * (wp + extra)) % 128 != 0 and extra < 128:
        extra += 1
    return wp + extra if (H * (wp + extra)) % 128 == 0 else wp


# -----------------------------------------------------------------------------
# Kernel: one batch element per grid step.
#   x_ref     : (1, C, H*W)      lane-dense input image
#   w_ref     : (37, Kpad)       fused weight, K padded to 128 (resident)
#   b_ref     : (37, 1)          fused bias (resident)
#   out_ref   : (1, 37, H*Wp)    lane-dense fused output (Wp-padded width)
#   xflat_ref : (C, Lx)          VMEM scratch, flattened zero-padded image
#   patch_ref : (Kpad, H*Wp)     VMEM scratch, transposed im2col patch
# -----------------------------------------------------------------------------
def block_kernel(x_ref, w_ref, b_ref, out_ref, xflat_ref, patch_ref, *, H, W, Wp):
    C = x_ref.shape[1]
    HWp = patch_ref.shape[1]
    KPAD = patch_ref.shape[0]
    KT = 27 * C
    n_out = out_ref.shape[1]

    # Zero the flattened padded image (halo + width padding must be 0).  Done
    # every step so the kernel stays correct when the "parallel" grid axis is
    # sharded across TensorCores.  TODO(synk): halo-only zero for large H, W.
    xflat_ref[...] = jnp.zeros(xflat_ref.shape, jnp.float32)

    # Keep the unused K tail finite: the matching weight columns are zero, but
    # uninitialized VMEM could hold NaNs and 0 * NaN = NaN.
    if KPAD > KT:
        patch_ref[KT:KPAD, :] = jnp.zeros((KPAD - KT, HWp), jnp.float32)

    # Scatter the input rows into the flattened padded image:
    #   xflat[c, (y+3)*Wp + 3 + x] = x[c, y, x]
    for y in range(H):
        dst = (y + 3) * Wp + 3
        xflat_ref[:, dst:dst + W] = x_ref[0, :, y * W:(y + 1) * W]

    # im2col: every tap is ONE contiguous lane slice of the flattened image
    # (length H*Wp); no reshape / cross-lane relayout.  Rows are ordered
    # (dilation, ky, kx, channel) to match the fused-weight fold.
    starts = []
    for d in (1, 2, 3):                       # dilation == conv padding
        for ky in range(3):
            for kx in range(3):
                starts.append(((3 - d) + ky * d) * Wp + (3 - d) + kx * d)

    group = 8 // C if (C <= 8 and 8 % C == 0) else 1   # 8-sublane-aligned stores
    t = 0
    while t < len(starts):
        n_tap = min(group, len(starts) - t)
        parts = [xflat_ref[:, s:s + HWp] for s in starts[t:t + n_tap]]
        tile = parts[0] if n_tap == 1 else jnp.concatenate(parts, axis=0)
        patch_ref[t * C:(t + n_tap) * C, :] = tile
        t += n_tap

    # Single fused MXU matmul: (37, Kpad) @ (Kpad, H*Wp), plus broadcast bias.
    out_t = jnp.dot(w_ref[...], patch_ref[...],
                    preferred_element_type=jnp.float32) + b_ref[...]

    # Store, then sigmoid only the last (branch2) row.
    out_ref[0] = out_t
    out_ref[0, n_out - 1:n_out, :] = jax.nn.sigmoid(out_t[n_out - 1:n_out, :])


# -----------------------------------------------------------------------------
# Host-side algebraic fold of all five convs into one (37, Kpad) weight + bias.
# -----------------------------------------------------------------------------
def fold_block_params(conv_ws, conv_bs, w_b1, b_b1, w_b2, b_b2):
    C = conv_ws[0].shape[1]
    hp = lax.Precision.HIGHEST

    # Block-diagonal dilated-conv weight: (27*C, 18), rows ordered
    # (dilation, ky, kx, c) to match the kernel's patch construction.
    wdil = jnp.zeros((27 * C, 18), jnp.float32)
    for d_idx in range(3):
        w_t = jnp.transpose(conv_ws[d_idx], (2, 3, 1, 0)).reshape(9 * C, 6)
        wdil = wdil.at[d_idx * 9 * C:(d_idx + 1) * 9 * C,
                       d_idx * 6:(d_idx + 1) * 6].set(w_t)
    bdil = jnp.concatenate(conv_bs)                       # (18,)

    wb1 = w_b1[:, :, 0, 0].T                              # (18 in, 18 out)
    wb2 = w_b2[:, :, 0, 0].T                              # (18 in, 1 out)

    w_fused = jnp.concatenate(
        [jnp.dot(wdil, wb1, precision=hp), wdil, jnp.dot(wdil, wb2, precision=hp)],
        axis=1)                                           # (27*C, 37)
    b_fused = jnp.concatenate(
        [jnp.dot(bdil, wb1, precision=hp) + b_b1, bdil,
         jnp.dot(bdil, wb2, precision=hp) + b_b2])        # (37,)

    kt = 27 * C
    kpad = _round_up(kt, 128)                             # full-lane weight
    w_t_full = jnp.concatenate(
        [w_fused.T, jnp.zeros((w_fused.shape[1], kpad - kt), jnp.float32)],
        axis=1)                                           # (37, Kpad)
    return w_t_full, b_fused[:, None]                     # (37, Kpad), (37, 1)


# -----------------------------------------------------------------------------
# Wrapper (NCHW in / NCHW out, matching PyTorch).
# -----------------------------------------------------------------------------
@jax.jit
def block_forward(x_nchw, w_fused_t, b_fused_col):
    N, C, H, W = x_nchw.shape
    HW = H * W
    Wp = _padded_width(H, W)
    HWp = H * Wp
    Lx = _round_up((H + 7) * Wp, 128)        # covers max tap slice end
    kpad = w_fused_t.shape[1]
    n_out = w_fused_t.shape[0]
    assert 27 * C <= kpad

    kernel = functools.partial(block_kernel, H=H, W=W, Wp=Wp)

    grid_spec = pltpu.PrefetchScalarGridSpec(
        num_scalar_prefetch=0,
        grid=(N,),
        in_specs=[
            pl.BlockSpec((1, C, HW), lambda n: (n, 0, 0)),
            pl.BlockSpec((n_out, kpad), lambda n: (0, 0)),  # weight resident
            pl.BlockSpec((n_out, 1), lambda n: (0, 0)),     # bias resident
        ],
        out_specs=pl.BlockSpec((1, n_out, HWp), lambda n: (n, 0, 0)),
        scratch_shapes=[
            pltpu.VMEM((C, Lx), jnp.float32),
            pltpu.VMEM((kpad, HWp), jnp.float32),
        ],
    )

    out_lane = pl.pallas_call(
        kernel,
        out_shape=jax.ShapeDtypeStruct((N, n_out, HWp), jnp.float32),
        grid_spec=grid_spec,
        compiler_params=pltpu.CompilerParams(
            dimension_semantics=("parallel",),
        ),
    )(x_nchw.reshape(N, C, HW).astype(jnp.float32), w_fused_t, b_fused_col)

    # Already NCHW after reshape; crop the Wp-W padded columns.
    out_full = out_lane.reshape(N, n_out, H, Wp)[:, :, :, :W]
    b2 = out_full[:, n_out - 1:n_out]        # sigmoid channel
    return out_full, b2


# -----------------------------------------------------------------------------
# Pure-JAX reference (lax.conv_general_dilated), used to validate the kernel.
# -----------------------------------------------------------------------------
def reference_forward(x_nchw, conv_ws, conv_bs, w_b1, b_b1, w_b2, b_b2):
    def conv(x, w, b, dilation, padding):
        y = lax.conv_general_dilated(
            x, w, window_strides=(1, 1),
            padding=((padding, padding), (padding, padding)),
            rhs_dilation=(dilation, dilation),
            dimension_numbers=('NCHW', 'OIHW', 'NCHW'),
            precision=lax.Precision.HIGHEST)
        return y + b[None, :, None, None]

    out1 = jnp.concatenate(
        [conv(x_nchw, conv_ws[i], conv_bs[i], i + 1, i + 1) for i in range(3)],
        axis=1)
    b1 = conv(out1, w_b1, b_b1, 1, 0)                 # 1x1 conv: no padding
    b2 = jax.nn.sigmoid(conv(out1, w_b2, b_b2, 1, 0))
    output = jnp.concatenate([b1, out1, b2], axis=1)
    return output, b2


if __name__ == "__main__":
    key = jax.random.PRNGKey(0)
    N, C, H, W = 2, 4, 16, 16

    keys = jax.random.split(key, 12)
    x = jax.random.normal(keys[0], (N, C, H, W), jnp.float32)

    # PyTorch-shaped parameters (OIHW), deterministic init.
    conv_ws = [jax.random.normal(keys[1 + i], (6, C, 3, 3), jnp.float32) * 0.1
               for i in range(3)]
    conv_bs = [jax.random.normal(keys[4 + i], (6,), jnp.float32) * 0.1
               for i in range(3)]
    w_b1 = jax.random.normal(keys[7], (18, 18, 1, 1), jnp.float32) * 0.1
    b_b1 = jax.random.normal(keys[8], (18,), jnp.float32) * 0.1
    w_b2 = jax.random.normal(keys[9], (1, 18, 1, 1), jnp.float32) * 0.1
    b_b2 = jax.random.normal(keys[10], (1,), jnp.float32) * 0.1

    wt, bt = fold_block_params(conv_ws, conv_bs, w_b1, b_b1, w_b2, b_b2)

    out, b2 = block_forward(x, wt, bt)
    jax.block_until_ready((out, b2))

    ref_out, ref_b2 = reference_forward(x, conv_ws, conv_bs, w_b1, b_b1,
                                        w_b2, b_b2)
    assert out.shape == (N, 37, H, W) and b2.shape == (N, 1, H, W)
    assert jnp.allclose(out, ref_out, atol=1e-3, rtol=1e-3), \
        float(jnp.max(jnp.abs(out - ref_out)))
    assert jnp.allclose(b2, ref_b2, atol=1e-3, rtol=1e-3), \
        float(jnp.max(jnp.abs(b2 - ref_b2)))

    print("KERNEL_OK")
</pallas_src>

<mosaic_0001>
module attributes {stable_mosaic.version = 11 : i64} {
  func.func @block_kernel(%arg0: i32, %arg1: memref<1x4x256xf32, #tpu.memory_space<vmem>>, %arg2: memref<37x128xf32, #tpu.memory_space<vmem>>, %arg3: memref<37x1xf32, #tpu.memory_space<vmem>>, %arg4: memref<1x37x384xf32, #tpu.memory_space<vmem>>, %arg5: memref<4x640xf32, #tpu.memory_space<vmem>>, %arg6: memref<128x384xf32, #tpu.memory_space<vmem>>) attributes {dimension_semantics = [#tpu.dimension_semantics<parallel>], iteration_bounds = array<i64: 2>, scalar_prefetch = 0 : i64, scratch_operands = 2 : i64, tpu.core_type = #tpu.core_type<tc>, window_params = [{transform_indices = @transform_0, window_bounds = array<i64: 1, 4, 256>}, {pipeline_mode = #tpu.pipeline_mode<synchronous>, transform_indices = @transform_1, window_bounds = array<i64: 37, 128>}, {pipeline_mode = #tpu.pipeline_mode<synchronous>, transform_indices = @transform_2, window_bounds = array<i64: 37, 1>}, {transform_indices = @transform_3, window_bounds = array<i64: 1, 37, 384>}]} {
    %cst = arith.constant 0.000000e+00 : f32
    %0 = vector.broadcast %cst : f32 to vector<4x640xf32>
    %c0 = arith.constant 0 : index
    %c0_0 = arith.constant 0 : index
    %1 = vector.load %arg5[%c0, %c0_0] : memref<4x640xf32, #tpu.memory_space<vmem>>, vector<4x640xf32>
    tpu.vector_store %arg5[%c0, %c0_0], %0 {strides = array<i32>} : memref<4x640xf32, #tpu.memory_space<vmem>>, vector<4x640xf32>,
    %cst_1 = arith.constant 0.000000e+00 : f32
    %2 = vector.broadcast %cst_1 : f32 to vector<20x384xf32>
    %c108 = arith.constant 108 : index
    %c0_2 = arith.constant 0 : index
    %3 = vector.load %arg6[%c108, %c0_2] : memref<128x384xf32, #tpu.memory_space<vmem>>, vector<20x384xf32>
    tpu.vector_store %arg6[%c108, %c0_2], %2 {strides = array<i32>} : memref<128x384xf32, #tpu.memory_space<vmem>>, vector<20x384xf32>,
    %c0_3 = arith.constant 0 : index
    %c0_4 = arith.constant 0 : index
    %c0_5 = arith.constant 0 : index
    %4 = vector.load %arg1[%c0_3, %c0_4, %c0_5] : memref<1x4x256xf32, #tpu.memory_space<vmem>>, vector<1x4x16xf32>
    %5 = vector.shape_cast %4 : vector<1x4x16xf32> to vector<4x16xf32>
    %c0_6 = arith.constant 0 : index
    %c75 = arith.constant 75 : index
    %6 = vector.load %arg5[%c0_6, %c75] : memref<4x640xf32, #tpu.memory_space<vmem>>, vector<4x16xf32>
    tpu.vector_store %arg5[%c0_6, %c75], %5 {strides = array<i32>} : memref<4x640xf32, #tpu.memory_space<vmem>>, vector<4x16xf32>,
    %c0_7 = arith.constant 0 : index
    %c0_8 = arith.constant 0 : index
    %c16 = arith.constant 16 : index
    %7 = vector.load %arg1[%c0_7, %c0_8, %c16] : memref<1x4x256xf32, #tpu.memory_space<vmem>>, vector<1x4x16xf32>
    %8 = vector.shape_cast %7 : vector<1x4x16xf32> to vector<4x16xf32>
    %c0_9 = arith.constant 0 : index
    %c99 = arith.constant 99 : index
    %9 = vector.load %arg5[%c0_9, %c99] : memref<4x640xf32, #tpu.memory_space<vmem>>, vector<4x16xf32>
    tpu.vector_store %arg5[%c0_9, %c99], %8 {strides = array<i32>} : memref<4x640xf32, #tpu.memory_space<vmem>>, vector<4x16xf32>,
    %c0_10 = arith.constant 0 : index
    %c0_11 = arith.constant 0 : index
    %c32 = arith.constant 32 : index
    %10 = vector.load %arg1[%c0_10, %c0_11, %c32] : memref<1x4x256xf32, #tpu.memory_space<vmem>>, vector<1x4x16xf32>
    %11 = vector.shape_cast %10 : vector<1x4x16xf32> to vector<4x16xf32>
    %c0_12 = arith.constant 0 : index
    %c123 = arith.constant 123 : index
    %12 = vector.load %arg5[%c0_12, %c123] : memref<4x640xf32, #tpu.memory_space<vmem>>, vector<4x16xf32>
    tpu.vector_store %arg5[%c0_12, %c123], %11 {strides = array<i32>} : memref<4x640xf32, #tpu.memory_space<vmem>>, vector<4x16xf32>,
    %c0_13 = arith.constant 0 : index
    %c0_14 = arith.constant 0 : index
    %c48 = arith.constant 48 : index
    %13 = vector.load %arg1[%c0_13, %c0_14, %c48] : memref<1x4x256xf32, #tpu.memory_space<vmem>>, vector<1x4x16xf32>
    %14 = vector.shape_cast %13 : vector<1x4x16xf32> to vector<4x16xf32>
    %c0_15 = arith.constant 0 : index
    %c147 = arith.constant 147 : index
    %15 = vector.load %arg5[%c0_15, %c147] : memref<4x640xf32, #tpu.memory_space<vmem>>, vector<4x16xf32>
    tpu.vector_store %arg5[%c0_15, %c147], %14 {strides = array<i32>} : memref<4x640xf32, #tpu.memory_space<vmem>>, vector<4x16xf32>,
    %c0_16 = arith.constant 0 : index
    %c0_17 = arith.constant 0 : index
    %c64 = arith.constant 64 : index
    %16 = vector.load %arg1[%c0_16, %c0_17, %c64] : memref<1x4x256xf32, #tpu.memory_space<vmem>>, vector<1x4x16xf32>
    %17 = vector.shape_cast %16 : vector<1x4x16xf32> to vector<4x16xf32>
    %c0_18 = arith.constant 0 : index
    %c171 = arith.constant 171 : index
    %18 = vector.load %arg5[%c0_18, %c171] : memref<4x640xf32, #tpu.memory_space<vmem>>, vector<4x16xf32>
    tpu.vector_store %arg5[%c0_18, %c171], %17 {strides = array<i32>} : memref<4x640xf32, #tpu.memory_space<vmem>>, vector<4x16xf32>,
    %c0_19 = arith.constant 0 : index
    %c0_20 = arith.constant 0 : index
    %c80 = arith.constant 80 : index
    %19 = vector.load %arg1[%c0_19, %c0_20, %c80] : memref<1x4x256xf32, #tpu.memory_space<vmem>>, vector<1x4x16xf32>
    %20 = vector.shape_cast %19 : vector<1x4x16xf32> to vector<4x16xf32>
    %c0_21 = arith.constant 0 : index
    %c195 = arith.constant 195 : index
    %21 = vector.load %arg5[%c0_21, %c195] : memref<4x640xf32, #tpu.memory_space<vmem>>, vector<4x16xf32>
    tpu.vector_store %arg5[%c0_21, %c195], %20 {strides = array<i32>} : memref<4x640xf32, #tpu.memory_space<vmem>>, vector<4x16xf32>,
    %c0_22 = arith.constant 0 : index
    %c0_23 = arith.constant 0 : index
    %c96 = arith.constant 96 : index
    %22 = vector.load %arg1[%c0_22, %c0_23, %c96] : memref<1x4x256xf32, #tpu.memory_space<vmem>>, vector<1x4x16xf32>
    %23 = vector.shape_cast %22 : vector<1x4x16xf32> to vector<4x16xf32>
    %c0_24 = arith.constant 0 : index
    %c219 = arith.constant 219 : index
    %24 = vector.load %arg5[%c0_24, %c219] : memref<4x640xf32, #tpu.memory_space<vmem>>, vector<4x16xf32>
    tpu.vector_store %arg5[%c0_24, %c219], %23 {strides = array<i32>} : memref<4x640xf32, #tpu.memory_space<vmem>>, vector<4x16xf32>,
    %c0_25 = arith.constant 0 : index
    %c0_26 = arith.constant 0 : index
    %c112 = arith.constant 112 : index
    %25 = vector.load %arg1[%c0_25, %c0_26, %c112] : memref<1x4x256xf32, #tpu.memory_space<vmem>>, vector<1x4x16xf32>
    %26 = vector.shape_cast %25 : vector<1x4x16xf32> to vector<4x16xf32>
    %c0_27 = arith.constant 0 : index
    %c243 = arith.constant 243 : index
    %27 = vector.load %arg5[%c0_27, %c243] : memref<4x640xf32, #tpu.memory_space<vmem>>, vector<4x16xf32>
    tpu.vector_store %arg5[%c0_27, %c243], %26 {strides = array<i32>} : memref<4x640xf32, #tpu.memory_space<vmem>>, vector<4x16xf32>,
    %c0_28 = arith.constant 0 : index
    %c0_29 = arith.constant 0 : index
    %c128 = arith.constant 128 : index
    %28 = vector.load %arg1[%c0_28, %c0_29, %c128] : memref<1x4x256xf32, #tpu.memory_space<vmem>>, vector<1x4x16xf32>
    %29 = vector.shape_cast %28 : vector<1x4x16xf32> to vector<4x16xf32>
    %c0_30 = arith.constant 0 : index
    %c267 = arith.constant 267 : index
    %30 = vector.load %arg5[%c0_30, %c267] : memref<4x640xf32, #tpu.memory_space<vmem>>, vector<4x16xf32>
    tpu.vector_store %arg5[%c0_30, %c267], %29 {strides = array<i32>} : memref<4x640xf32, #tpu.memory_space<vmem>>, vector<4x16xf32>,
    %c0_31 = arith.constant 0 : index
    %c0_32 = arith.constant 0 : index
    %c144 = arith.constant 144 : index
    %31 = vector.load %arg1[%c0_31, %c0_32, %c144] : memref<1x4x256xf32, #tpu.memory_space<vmem>>, vector<1x4x16xf32>
    %32 = vector.shape_cast %31 : vector<1x4x16xf32> to vector<4x16xf32>
    %c0_33 = arith.constant 0 : index
    %c291 = arith.constant 291 : index
    %33 = vector.load %arg5[%c0_33, %c291] : memref<4x640xf32, #tpu.memory_space<vmem>>, vector<4x16xf32>
    tpu.vector_store %arg5[%c0_33, %c291], %32 {strides = array<i32>} : memref<4x640xf32, #tpu.memory_space<vmem>>, vector<4x16xf32>,
    %c0_34 = arith.constant 0 : index
    %c0_35 = arith.constant 0 : index
    %c160 = arith.constant 160 : index
    %34 = vector.load %arg1[%c0_34, %c0_35, %c160] : memref<1x4x256xf32, #tpu.memory_space<vmem>>, vector<1x4x16xf32>
    %35 = vector.shape_cast %34 : vector<1x4x16xf32> to vector<4x16xf32>
    %c0_36 = arith.constant 0 : index
    %c315 = arith.constant 315 : index
    %36 = vector.load %arg5[%c0_36, %c315] : memref<4x640xf32, #tpu.memory_space<vmem>>, vector<4x16xf32>
    tpu.vector_store %arg5[%c0_36, %c315], %35 {strides = array<i32>} : memref<4x640xf32, #tpu.memory_space<vmem>>, vector<4x16xf32>,
    %c0_37 = arith.constant 0 : index
    %c0_38 = arith.constant 0 : index
    %c176 = arith.constant 176 : index
    %37 = vector.load %arg1[%c0_37, %c0_38, %c176] : memref<1x4x256xf32, #tpu.memory_space<vmem>>, vector<1x4x16xf32>
    %38 = vector.shape_cast %37 : vector<1x4x16xf32> to vector<4x16xf32>
    %c0_39 = arith.constant 0 : index
    %c339 = arith.constant 339 : index
    %39 = vector.load %arg5[%c0_39, %c339] : memref<4x640xf32, #tpu.memory_space<vmem>>, vector<4x16xf32>
    tpu.vector_store %arg5[%c0_39, %c339], %38 {strides = array<i32>} : memref<4x640xf32, #tpu.memory_space<vmem>>, vector<4x16xf32>,
    %c0_40 = arith.constant 0 : index
    %c0_41 = arith.constant 0 : index
    %c192 = arith.constant 192 : index
    %40 = vector.load %arg1[%c0_40, %c0_41, %c192] : memref<1x4x256xf32, #tpu.memory_space<vmem>>, vector<1x4x16xf32>
    %41 = vector.shape_cast %40 : vector<1x4x16xf32> to vector<4x16xf32>
    %c0_42 = arith.constant 0 : index
    %c363 = arith.constant 363 : index
    %42 = vector.load %arg5[%c0_42, %c363] : memref<4x640xf32, #tpu.memory_space<vmem>>, vector<4x16xf32>
    tpu.vector_store %arg5[%c0_42, %c363], %41 {strides = array<i32>} : memref<4x640xf32, #tpu.memory_space<vmem>>, vector<4x16xf32>,
    %c0_43 = arith.constant 0 : index
    %c0_44 = arith.constant 0 : index
    %c208 = arith.constant 208 : index
    %43 = vector.load %arg1[%c0_43, %c0_44, %c208] : memref<1x4x256xf32, #tpu.memory_space<vmem>>, vector<1x4x16xf32>
    %44 = vector.shape_cast %43 : vector<1x4x16xf32> to vector<4x16xf32>
    %c0_45 = arith.constant 0 : index
    %c387 = arith.constant 387 : index
    %45 = vector.load %arg5[%c0_45, %c387] : memref<4x640xf32, #tpu.memory_space<vmem>>, vector<4x16xf32>
    tpu.vector_store %arg5[%c0_45, %c387], %44 {strides = array<i32>} : memref<4x640xf32, #tpu.memory_space<vmem>>, vector<4x16xf32>,
    %c0_46 = arith.constant 0 : index
    %c0_47 = arith.constant 0 : index
    %c224 = arith.constant 224 : index
    %46 = vector.load %arg1[%c0_46, %c0_47, %c224] : memref<1x4x256xf32, #tpu.memory_space<vmem>>, vector<1x4x16xf32>
    %47 = vector.shape_cast %46 : vector<1x4x16xf32> to vector<4x16xf32>
    %c0_48 = arith.constant 0 : index
    %c411 = arith.constant 411 : index
    %48 = vector.load %arg5[%c0_48, %c411] : memref<4x640xf32, #tpu.memory_space<vmem>>, vector<4x16xf32>
    tpu.vector_store %arg5[%c0_48, %c411], %47 {strides = array<i32>} : memref<4x640xf32, #tpu.memory_space<vmem>>, vector<4x16xf32>,
    %c0_49 = arith.constant 0 : index
    %c0_50 = arith.constant 0 : index
    %c240 = arith.constant 240 : index
    %49 = vector.load %arg1[%c0_49, %c0_50, %c240] : memref<1x4x256xf32, #tpu.memory_space<vmem>>, vector<1x4x16xf32>
    %50 = vector.shape_cast %49 : vector<1x4x16xf32> to vector<4x16xf32>
    %c0_51 = arith.constant 0 : index
    %c435 = arith.constant 435 : index
    %51 = vector.load %arg5[%c0_51, %c435] : memref<4x640xf32, #tpu.memory_space<vmem>>, vector<4x16xf32>
    tpu.vector_store %arg5[%c0_51, %c435], %50 {strides = array<i32>} : memref<4x640xf32, #tpu.memory_space<vmem>>, vector<4x16xf32>,
    %c0_52 = arith.constant 0 : index
    %c50 = arith.constant 50 : index
    %52 = vector.load %arg5[%c0_52, %c50] : memref<4x640xf32, #tpu.memory_space<vmem>>, vector<4x384xf32>
    %c0_53 = arith.constant 0 : index
    %c51 = arith.constant 51 : index
    %53 = vector.load %arg5[%c0_53, %c51] : memref<4x640xf32, #tpu.memory_space<vmem>>, vector<4x384xf32>
    %54 = tpu.concatenate %52, %53 in 0 : vector<4x384xf32>, vector<4x384xf32> -> vector<8x384xf32>
    %c0_54 = arith.constant 0 : index
    %c0_55 = arith.constant 0 : index
    %55 = vector.load %arg6[%c0_54, %c0_55] : memref<128x384xf32, #tpu.memory_space<vmem>>, vector<8x384xf32>
    tpu.vector_store %arg6[%c0_54, %c0_55], %54 {strides = array<i32>} : memref<128x384xf32, #tpu.memory_space<vmem>>, vector<8x384xf32>,
    %c0_56 = arith.constant 0 : index
    %c52 = arith.constant 52 : index
    %56 = vector.load %arg5[%c0_56, %c52] : memref<4x640xf32, #tpu.memory_space<vmem>>, vector<4x384xf32>
    %c0_57 = arith.constant 0 : index
    %c74 = arith.constant 74 : index
    %57 = vector.load %arg5[%c0_57, %c74] : memref<4x640xf32, #tpu.memory_space<vmem>>, vector<4x384xf32>
    %58 = tpu.concatenate %56, %57 in 0 : vector<4x384xf32>, vector<4x384xf32> -> vector<8x384xf32>
    %c8 = arith.constant 8 : index
    %c0_58 = arith.constant 0 : index
    %59 = vector.load %arg6[%c8, %c0_58] : memref<128x384xf32, #tpu.memory_space<vmem>>, vector<8x384xf32>
    tpu.vector_store %arg6[%c8, %c0_58], %58 {strides = array<i32>} : memref<128x384xf32, #tpu.memory_space<vmem>>, vector<8x384xf32>,
    %c0_59 = arith.constant 0 : index
    %c75_60 = arith.constant 75 : index
    %60 = vector.load %arg5[%c0_59, %c75_60] : memref<4x640xf32, #tpu.memory_space<vmem>>, vector<4x384xf32>
    %c0_61 = arith.constant 0 : index
    %c76 = arith.constant 76 : index
    %61 = vector.load %arg5[%c0_61, %c76] : memref<4x640xf32, #tpu.memory_space<vmem>>, vector<4x384xf32>
    %62 = tpu.concatenate %60, %61 in 0 : vector<4x384xf32>, vector<4x384xf32> -> vector<8x384xf32>
    %c16_62 = arith.constant 16 : index
    %c0_63 = arith.constant 0 : index
    %63 = vector.load %arg6[%c16_62, %c0_63] : memref<128x384xf32, #tpu.memory_space<vmem>>, vector<8x384xf32>
    tpu.vector_store %arg6[%c16_62, %c0_63], %62 {strides = array<i32>} : memref<128x384xf32, #tpu.memory_space<vmem>>, vector<8x384xf32>,
    %c0_64 = arith.constant 0 : index
    %c98 = arith.constant 98 : index
    %64 = vector.load %arg5[%c0_64, %c98] : memref<4x640xf32, #tpu.memory_space<vmem>>, vector<4x384xf32>
    %c0_65 = arith.constant 0 : index
    %c99_66 = arith.constant 99 : index
    %65 = vector.load %arg5[%c0_65, %c99_66] : memref<4x640xf32, #tpu.memory_space<vmem>>, vector<4x384xf32>
    %66 = tpu.concatenate %64, %65 in 0 : vector<4x384xf32>, vector<4x384xf32> -> vector<8x384xf32>
    %c24 = arith.constant 24 : index
    %c0_67 = arith.constant 0 : index
    %67 = vector.load %arg6[%c24, %c0_67] : memref<128x384xf32, #tpu.memory_space<vmem>>, vector<8x384xf32>
    tpu.vector_store %arg6[%c24, %c0_67], %66 {strides = array<i32>} : memref<128x384xf32, #tpu.memory_space<vmem>>, vector<8x384xf32>,
    %c0_68 = arith.constant 0 : index
    %c100 = arith.constant 100 : index
    %68 = vector.load %arg5[%c0_68, %c100] : memref<4x640xf32, #tpu.memory_space<vmem>>, vector<4x384xf32>
    %c0_69 = arith.constant 0 : index
    %c25 = arith.constant 25 : index
    %69 = vector.load %arg5[%c0_69, %c25] : memref<4x640xf32, #tpu.memory_space<vmem>>, vector<4x384xf32>
    %70 = tpu.concatenate %68, %69 in 0 : vector<4x384xf32>, vector<4x384xf32> -> vector<8x384xf32>
    %c32_70 = arith.constant 32 : index
    %c0_71 = arith.constant 0 : index
    %71 = vector.load %arg6[%c32_70, %c0_71] : memref<128x384xf32, #tpu.memory_space<vmem>>, vector<8x384xf32>
    tpu.vector_store %arg6[%c32_70, %c0_71], %70 {strides = array<i32>} : memref<128x384xf32, #tpu.memory_space<vmem>>, vector<8x384xf32>,
    %c0_72 = arith.constant 0 : index
    %c27 = arith.constant 27 : index
    %72 = vector.load %arg5[%c0_72, %c27] : memref<4x640xf32, #tpu.memory_space<vmem>>, vector<4x384xf32>
    %c0_73 = arith.constant 0 : index
    %c29 = arith.constant 29 : index
    %73 = vector.load %arg5[%c0_73, %c29] : memref<4x640xf32, #tpu.memory_space<vmem>>, vector<4x384xf32>
    %74 = tpu.concatenate %72, %73 in 0 : vector<4x384xf32>, vector<4x384xf32> -> vector<8x384xf32>
    %c40 = arith.constant 40 : index
    %c0_74 = arith.constant 0 : index
    %75 = vector.load %arg6[%c40, %c0_74] : memref<128x384xf32, #tpu.memory_space<vmem>>, vector<8x384xf32>
    tpu.vector_store %arg6[%c40, %c0_74], %74 {strides = array<i32>} : memref<128x384xf32, #tpu.memory_space<vmem>>, vector<8x384xf32>,
    %c0_75 = arith.constant 0 : index
    %c73 = arith.constant 73 : index
    %76 = vector.load %arg5[%c0_75, %c73] : memref<4x640xf32, #tpu.memory_space<vmem>>, vector<4x384xf32>
    %c0_76 = arith.constant 0 : index
    %c75_77 = arith.constant 75 : index
    %77 = vector.load %arg5[%c0_76, %c75_77] : memref<4x640xf32, #tpu.memory_space<vmem>>, vector<4x384xf32>
    %78 = tpu.concatenate %76, %77 in 0 : vector<4x384xf32>, vector<4x384xf32> -> vector<8x384xf32>
    %c48_78 = arith.constant 48 : index
    %c0_79 = arith.constant 0 : index
    %79 = vector.load %arg6[%c48_78, %c0_79] : memref<128x384xf32, #tpu.memory_space<vmem>>, vector<8x384xf32>
    tpu.vector_store %arg6[%c48_78, %c0_79], %78 {strides = array<i32>} : memref<128x384xf32, #tpu.memory_space<vmem>>, vector<8x384xf32>,
    %c0_80 = arith.constant 0 : index
    %c77 = arith.constant 77 : index
    %80 = vector.load %arg5[%c0_80, %c77] : memref<4x640xf32, #tpu.memory_space<vmem>>, vector<4x384xf32>
    %c0_81 = arith.constant 0 : index
    %c121 = arith.constant 121 : index
    %81 = vector.load %arg5[%c0_81, %c121] : memref<4x640xf32, #tpu.memory_space<vmem>>, vector<4x384xf32>
    %82 = tpu.concatenate %80, %81 in 0 : vector<4x384xf32>, vector<4x384xf32> -> vector<8x384xf32>
    %c56 = arith.constant 56 : index
    %c0_82 = arith.constant 0 : index
    %83 = vector.load %arg6[%c56, %c0_82] : memref<128x384xf32, #tpu.memory_space<vmem>>, vector<8x384xf32>
    tpu.vector_store %arg6[%c56, %c0_82], %82 {strides = array<i32>} : memref<128x384xf32, #tpu.memory_space<vmem>>, vector<8x384xf32>,
    %c0_83 = arith.constant 0 : index
    %c123_84 = arith.constant 123 : index
    %84 = vector.load %arg5[%c0_83, %c123_84] : memref<4x640xf32, #tpu.memory_space<vmem>>, vector<4x384xf32>
    %c0_85 = arith.constant 0 : index
    %c125 = arith.constant 125 : index
    %85 = vector.load %arg5[%c0_85, %c125] : memref<4x640xf32, #tpu.memory_space<vmem>>, vector<4x384xf32>
    %86 = tpu.concatenate %84, %85 in 0 : vector<4x384xf32>, vector<4x384xf32> -> vector<8x384xf32>
    %c64_86 = arith.constant 64 : index
    %c0_87 = arith.constant 0 : index
    %87 = vector.load %arg6[%c64_86, %c0_87] : memref<128x384xf32, #tpu.memory_space<vmem>>, vector<8x384xf32>
    tpu.vector_store %arg6[%c64_86, %c0_87], %86 {strides = array<i32>} : memref<128x384xf32, #tpu.memory_space<vmem>>, vector<8x384xf32>,
    %c0_88 = arith.constant 0 : index
    %c0_89 = arith.constant 0 : index
    %88 = vector.load %arg5[%c0_88, %c0_89] : memref<4x640xf32, #tpu.memory_space<vmem>>, vector<4x384xf32>
    %c0_90 = arith.constant 0 : index
    %c3 = arith.constant 3 : index
    %89 = vector.load %arg5[%c0_90, %c3] : memref<4x640xf32, #tpu.memory_space<vmem>>, vector<4x384xf32>
    %90 = tpu.concatenate %88, %89 in 0 : vector<4x384xf32>, vector<4x384xf32> -> vector<8x384xf32>
    %c72 = arith.constant 72 : index
    %c0_91 = arith.constant 0 : index
    %91 = vector.load %arg6[%c72, %c0_91] : memref<128x384xf32, #tpu.memory_space<vmem>>, vector<8x384xf32>
    tpu.vector_store %arg6[%c72, %c0_91], %90 {strides = array<i32>} : memref<128x384xf32, #tpu.memory_space<vmem>>, vector<8x384xf32>,
    %c0_92 = arith.constant 0 : index
    %c6 = arith.constant 6 : index
    %92 = vector.load %arg5[%c0_92, %c6] : memref<4x640xf32, #tpu.memory_space<vmem>>, vector<4x384xf32>
    %c0_93 = arith.constant 0 : index
    %c72_94 = arith.constant 72 : index
    %93 = vector.load %arg5[%c0_93, %c72_94] : memref<4x640xf32, #tpu.memory_space<vmem>>, vector<4x384xf32>
    %94 = tpu.concatenate %92, %93 in 0 : vector<4x384xf32>, vector<4x384xf32> -> vector<8x384xf32>
    %c80_95 = arith.constant 80 : index
    %c0_96 = arith.constant 0 : index
    %95 = vector.load %arg6[%c80_95, %c0_96] : memref<128x384xf32, #tpu.memory_space<vmem>>, vector<8x384xf32>
    tpu.vector_store %arg6[%c80_95, %c0_96], %94 {strides = array<i32>} : memref<128x384xf32, #tpu.memory_space<vmem>>, vector<8x384xf32>,
    %c0_97 = arith.constant 0 : index
    %c75_98 = arith.constant 75 : index
    %96 = vector.load %arg5[%c0_97, %c75_98] : memref<4x640xf32, #tpu.memory_space<vmem>>, vector<4x384xf32>
    %c0_99 = arith.constant 0 : index
    %c78 = arith.constant 78 : index
    %97 = vector.load %arg5[%c0_99, %c78] : memref<4x640xf32, #tpu.memory_space<vmem>>, vector<4x384xf32>
    %98 = tpu.concatenate %96, %97 in 0 : vector<4x384xf32>, vector<4x384xf32> -> vector<8x384xf32>
    %c88 = arith.constant 88 : index
    %c0_100 = arith.constant 0 : index
    %99 = vector.load %arg6[%c88, %c0_100] : memref<128x384xf32, #tpu.memory_space<vmem>>, vector<8x384xf32>
    tpu.vector_store %arg6[%c88, %c0_100], %98 {strides = array<i32>} : memref<128x384xf32, #tpu.memory_space<vmem>>, vector<8x384xf32>,
    %c0_101 = arith.constant 0 : index
    %c144_102 = arith.constant 144 : index
    %100 = vector.load %arg5[%c0_101, %c144_102] : memref<4x640xf32, #tpu.memory_space<vmem>>, vector<4x384xf32>
    %c0_103 = arith.constant 0 : index
    %c147_104 = arith.constant 147 : index
    %101 = vector.load %arg5[%c0_103, %c147_104] : memref<4x640xf32, #tpu.memory_space<vmem>>, vector<4x384xf32>
    %102 = tpu.concatenate %100, %101 in 0 : vector<4x384xf32>, vector<4x384xf32> -> vector<8x384xf32>
    %c96_105 = arith.constant 96 : index
    %c0_106 = arith.constant 0 : index
    %103 = vector.load %arg6[%c96_105, %c0_106] : memref<128x384xf32, #tpu.memory_space<vmem>>, vector<8x384xf32>
    tpu.vector_store %arg6[%c96_105, %c0_106], %102 {strides = array<i32>} : memref<128x384xf32, #tpu.memory_space<vmem>>, vector<8x384xf32>,
    %c0_107 = arith.constant 0 : index
    %c150 = arith.constant 150 : index
    %104 = vector.load %arg5[%c0_107, %c150] : memref<4x640xf32, #tpu.memory_space<vmem>>, vector<4x384xf32>
    %c104 = arith.constant 104 : index
    %c0_108 = arith.constant 0 : index
    %105 = vector.load %arg6[%c104, %c0_108] : memref<128x384xf32, #tpu.memory_space<vmem>>, vector<4x384xf32>
    tpu.vector_store %arg6[%c104, %c0_108], %104 {strides = array<i32>} : memref<128x384xf32, #tpu.memory_space<vmem>>, vector<4x384xf32>,
    %c0_109 = arith.constant 0 : index
    %c0_110 = arith.constant 0 : index
    %106 = vector.load %arg2[%c0_109, %c0_110] : memref<37x128xf32, #tpu.memory_space<vmem>>, vector<37x128xf32>
    %c0_111 = arith.constant 0 : index
    %c0_112 = arith.constant 0 : index
    %107 = vector.load %arg6[%c0_111, %c0_112] : memref<128x384xf32, #tpu.memory_space<vmem>>, vector<128x384xf32>
    %cst_113 = arith.constant dense<0.000000e+00> : vector<37x384xf32>
    %108 = tpu.matmul %106, %107, %cst_113 {dimension_numbers = #tpu.dot_dimension_numbers<[1], [0], [0], [1], [0, 0, 1, 1], [], []>} : vector<37x128xf32>, vector<128x384xf32>, vector<37x384xf32> -> vector<37x384xf32>
    %c0_114 = arith.constant 0 : index
    %c0_115 = arith.constant 0 : index
    %109 = vector.load %arg3[%c0_114, %c0_115] : memref<37x1xf32, #tpu.memory_space<vmem>>, vector<37x1xf32>
    %110 = vector.broadcast %109 : vector<37x1xf32> to vector<37x384xf32>
    %111 = arith.addf %108, %110 : vector<37x384xf32>
    %c0_116 = arith.constant 0 : index
    %c0_117 = arith.constant 0 : index
    %c0_118 = arith.constant 0 : index
    %112 = vector.load %arg4[%c0_116, %c0_117, %c0_118] : memref<1x37x384xf32, #tpu.memory_space<vmem>>, vector<1x37x384xf32>
    %113 = vector.shape_cast %112 : vector<1x37x384xf32> to vector<37x384xf32>
    %114 = vector.shape_cast %111 : vector<37x384xf32> to vector<1x37x384xf32>
    tpu.vector_store %arg4[%c0_116, %c0_117, %c0_118], %114 {strides = array<i32>} : memref<1x37x384xf32, #tpu.memory_space<vmem>>, vector<1x37x384xf32>,
    %115 = vector.extract_strided_slice %111 {offsets = [36, 0], sizes = [1, 384], strides = [1, 1]} : vector<37x384xf32> to vector<1x384xf32>
    %116 = arith.negf %115 : vector<1x384xf32>
    %117 = math.exp %116 : vector<1x384xf32>
    %cst_119 = arith.constant 1.000000e+00 : f32
    %118 = vector.broadcast %cst_119 : f32 to vector<1x384xf32>
    %119 = arith.addf %118, %117 : vector<1x384xf32>
    %120 = arith.divf %118, %119 : vector<1x384xf32>
    %c0_120 = arith.constant 0 : index
    %c36 = arith.constant 36 : index
    %c0_121 = arith.constant 0 : index
    %121 = vector.load %arg4[%c0_120, %c36, %c0_121] : memref<1x37x384xf32, #tpu.memory_space<vmem>>, vector<1x1x384xf32>
    %122 = vector.shape_cast %121 : vector<1x1x384xf32> to vector<1x384xf32>
    %123 = vector.shape_cast %120 : vector<1x384xf32> to vector<1x1x384xf32>
    tpu.vector_store %arg4[%c0_120, %c36, %c0_121], %123 {strides = array<i32>} : memref<1x37x384xf32, #tpu.memory_space<vmem>>, vector<1x1x384xf32>,
    return
  }
  func.func @transform_0(%arg0: i32) -> (i32, i32, i32) {
    %c0_i32 = arith.constant 0 : i32
    %c0_i32_0 = arith.constant 0 : i32
    %c0_i32_1 = arith.constant 0 : i32
    return %arg0, %c0_i32, %c0_i32_0 : i32, i32, i32
  }
  func.func @transform_1(%arg0: i32) -> (i32, i32) {
    %c0_i32 = arith.constant 0 : i32
    %c0_i32_0 = arith.constant 0 : i32
    %c0_i32_1 = arith.constant 0 : i32
    return %c0_i32, %c0_i32_0 : i32, i32
  }
  func.func @transform_2(%arg0: i32) -> (i32, i32) {
    %c0_i32 = arith.constant 0 : i32
    %c0_i32_0 = arith.constant 0 : i32
    %c0_i32_1 = arith.constant 0 : i32
    return %c0_i32, %c0_i32_0 : i32, i32
  }
  func.func @transform_3(%arg0: i32) -> (i32, i32, i32) {
    %c0_i32 = arith.constant 0 : i32
    %c0_i32_0 = arith.constant 0 : i32
    %c0_i32_1 = arith.constant 0 : i32
    return %arg0, %c0_i32, %c0_i32_0 : i32, i32, i32
  }
}

</mosaic_0001>

<llo_original>
// kernel: block_forward.1
$region0: #{block_forward.1}
  #allocation0 [shape = 'u32[]', space=smem, size = 0x4, offset = 0x4, fixed_abs, tag = 'smem constant byte address 0x4 - core index']
  #allocation1 [shape = 'u32[72,128]{1,0:T(1,128)}', space=vmem, size = 0x9000, scoped, tag = 'internal scratch']
  #allocation2 [shape = 'f32[4,640]{1,0:T(4,128)}', space=vmem, size = 0x2800, scoped, tag = 'scratch operand']
  #allocation3 [shape = 'f32[128,384]{1,0:T(8,128)}', space=vmem, size = 0x30000, scoped, tag = 'scratch operand']
  %s0 = inlined_call_operand.vmem [shape: f32[2,4,256], index: 0, kind: input, shape index: {}]
  %s1 = inlined_call_operand.vmem [shape: f32[37,128], index: 1, kind: input, shape index: {}]
  %s2 = inlined_call_operand.vmem [shape: f32[37,1], index: 2, kind: input, shape index: {}]
  %s3 = inlined_call_operand.vmem [shape: f32[2,37,384], index: 3, kind: output, shape index: {}]
  %s4 = sld [smem:[#allocation0]]
  $region45: #{block_forward.1} parent=0
    _
  %s6 = ssub.s32 1, %s4
  %s7 = scalar_select 0, %s6, %s4
  loop: start=0, step=1, limit=4
  $region2: #{block_forward.1} parent=0 // loop_pre_header
    _
  $region3: #{block_forward.1} parent=0 // loop_header
    %s9 = sphi 0, %s13
    %p10 = scmp.ge.s32.totalorder %s9, 4
    %s19 = sphi 0, %s21
    %s22 = sphi 0, %s19
    %s23 = sphi 0, %s22
    %s39 = sphi 0, %s23
    %s43 = sphi 0, %s43
    %s45 = sphi 0, %s43
    %s46 = sphi 0, %s45
    %s60 = sphi 0, %s46
    %s64 = sphi 0, %s64
    %s66 = sphi 0, %s64
    %s67 = sphi 0, %s66
    %s81 = sphi 0, %s67
    %s87 = sphi 0, %s89
    %s90 = sphi 0, %s87
    %s91 = sphi 0, %s90
    %s107 = sphi 0, %s91
  $region4: #{block_forward.1} parent=0 // loop_header_branch
    %12 = sbr.rel (%p10) target = $region8
  $region5: #{block_forward.1} parent=0 // loop_body
    %s14 = ssub.s32 %s9, 1
    %s15 = ssub.s32 %s9, 2
    %s16 = sadd.s32 %s9, 1
    %s17 = ssub.s32 %s9, %s16
    %p18 = scmp.eq.s32.totalorder %s17, 0
    %s20 = sadd.s32 %s19, 1
    %s21 = scalar_select %p18, %s19, %s20
    %p24 = pneg %p18
    %p25 = scmp.eq.s32.totalorder %s9, 1
    %p26 = por %p24, %p25
    %p27 = scmp.ne.s32.totalorder %s19, %s22
    %p28 = scmp.eq.s32.totalorder %s9, 0
    %p29 = por %p27, %p28
    %p30 = scmp.ne.s32.totalorder %s19, %s22
    %p31 = scmp.eq.s32.totalorder %s14, 1
    %p32 = por %p30, %p31
    %p33 = scmp.ne.s32.totalorder %s22, %s23
    %p34 = scmp.eq.s32.totalorder %s14, 0
    %p35 = por %p33, %p34
    %p36 = scmp.ne.s32.totalorder %s22, %s23
    %p37 = scmp.eq.s32.totalorder %s15, 1
    %p38 = por %p36, %p37
    %p40 = scmp.ne.s32.totalorder %s23, %s39
    %p41 = scmp.eq.s32.totalorder %s15, 0
    %p42 = por %p40, %p41
    %s44 = sadd.s32 %s43, 1
    %p47 = scmp.eq.s32.totalorder %s9, 1
    %p48 = scmp.ne.s32.totalorder %s43, %s45
    %p49 = scmp.eq.s32.totalorder %s9, 0
    %p50 = por %p48, %p49
    %p51 = scmp.ne.s32.totalorder %s43, %s45
    %p52 = scmp.eq.s32.totalorder %s14, 1
    %p53 = por %p51, %p52
    %p54 = scmp.ne.s32.totalorder %s45, %s46
    %p55 = scmp.eq.s32.totalorder %s14, 0
    %p56 = por %p54, %p55
    %p57 = scmp.ne.s32.totalorder %s45, %s46
    %p58 = scmp.eq.s32.totalorder %s15, 1
    %p59 = por %p57, %p58
    %p61 = scmp.ne.s32.totalorder %s46, %s60
    %p62 = scmp.eq.s32.totalorder %s15, 0
    %p63 = por %p61, %p62
    %s65 = sadd.s32 %s64, 1
    %p68 = scmp.eq.s32.totalorder %s9, 1
    %p69 = scmp.ne.s32.totalorder %s64, %s66
    %p70 = scmp.eq.s32.totalorder %s9, 0
    %p71 = por %p69, %p70
    %p72 = scmp.ne.s32.totalorder %s64, %s66
    %p73 = scmp.eq.s32.totalorder %s14, 1
    %p74 = por %p72, %p73
    %p75 = scmp.ne.s32.totalorder %s66, %s67
    %p76 = scmp.eq.s32.totalorder %s14, 0
    %p77 = por %p75, %p76
    %p78 = scmp.ne.s32.totalorder %s66, %s67
    %p79 = scmp.eq.s32.totalorder %s15, 1
    %p80 = por %p78, %p79
    %p82 = scmp.ne.s32.totalorder %s67, %s81
    %p83 = scmp.eq.s32.totalorder %s15, 0
    %p84 = por %p82, %p83
    %s85 = ssub.s32 %s9, %s16
    %p86 = scmp.eq.s32.totalorder %s85, 0
    %s88 = sadd.s32 %s87, 1
    %s89 = scalar_select %p86, %s87, %s88
    %p92 = pneg %p86
    %p93 = scmp.eq.s32.totalorder %s9, 1
    %p94 = por %p92, %p93
    %p95 = scmp.ne.s32.totalorder %s87, %s90
    %p96 = scmp.eq.s32.totalorder %s9, 0
    %p97 = por %p95, %p96
    %p98 = scmp.ne.s32.totalorder %s87, %s90
    %p99 = scmp.eq.s32.totalorder %s14, 1
    %p100 = por %p98, %p99
    %p101 = scmp.ne.s32.totalorder %s90, %s91
    %p102 = scmp.eq.s32.totalorder %s14, 0
    %p103 = por %p101, %p102
    %p104 = scmp.ne.s32.totalorder %s90, %s91
    %p105 = scmp.eq.s32.totalorder %s15, 1
    %p106 = por %p104, %p105
    %p108 = scmp.ne.s32.totalorder %s91, %s107
    %p109 = scmp.eq.s32.totalorder %s15, 0
    %p110 = por %p108, %p109
    %p111 = scmp.le.s32.totalorder 1, %s9
    %p112 = scmp.lt.s32.totalorder %s9, 3
    %p113 = pnand %p111, %p112
    %p114 = pneg %p113
    // Predicated region
    $region9: #{block_forward.1} parent=5 // pred_check
      _
    $region10: #{block_forward.1} parent=5 // pred_check_branch
      %116 = sbr.rel (%p113) target = $region12
    $region11: #{block_forward.1} parent=5 // pred_region
      %s117 = ssub.s32 %s9, 1
      // Predicated region
      $region13: #{block_forward.1} parent=11 // pred_check
        %p118 = pneg %p56
      $region14: #{block_forward.1} parent=11 // pred_check_branch
        %120 = sbr.rel (%p118) target = $region16
      $region15: #{block_forward.1} parent=11 // pred_region
        _
      $region16: #{block_forward.1} parent=11 // pred_fallthru
        _
      // Predicated region
      $region17: #{block_forward.1} parent=11 // pred_check
        %p121 = pneg %p77
      $region18: #{block_forward.1} parent=11 // pred_check_branch
        %123 = sbr.rel (%p121) target = $region20
      $region19: #{block_forward.1} parent=11 // pred_region
        _
      $region20: #{block_forward.1} parent=11 // pred_fallthru
        _
    $region12: #{block_forward.1} parent=5 // pred_fallthru
      _
    %p124 = scmp.lt.s32.totalorder %s9, 2
    // Predicated region
    $region21: #{block_forward.1} parent=5 // pred_check
      %p125 = pneg %p124
    $region22: #{block_forward.1} parent=5 // pred_check_branch
      %127 = sbr.rel (%p125) target = $region24
    $region23: #{block_forward.1} parent=5 // pred_region
      // Predicated region
      $region25: #{block_forward.1} parent=23 // pred_check
        %p128 = pneg %p29
      $region26: #{block_forward.1} parent=23 // pred_check_branch
        %130 = sbr.rel (%p128) target = $region28
      $region27: #{block_forward.1} parent=23 // pred_region
        %p131 = scmp.lt.s32.totalorder %s9, 1
        %s132 = scalar_select %p131, %s9, 1
        %s133 = smul.addr %s132, 2
        %s134 = smul.addr %s133, 4
        %s135 = scalar_lea.vmem %s0, %s134
      $region28: #{block_forward.1} parent=23 // pred_fallthru
        _
    $region24: #{block_forward.1} parent=5 // pred_fallthru
      _
    %p136 = scmp.le.s32.totalorder 1, %s9
    %p137 = scmp.lt.s32.totalorder %s9, 3
    %p138 = pnand %p136, %p137
    %p139 = pneg %p138
    // Predicated region
    $region29: #{block_forward.1} parent=5 // pred_check
      _
    $region30: #{block_forward.1} parent=5 // pred_check_branch
      %141 = sbr.rel (%p138) target = $region32
    $region31: #{block_forward.1} parent=5 // pred_region
      %s142 = ssub.s32 %s9, 1
      %p143 = scmp.lt.s32.totalorder %s14, 1
      %s144 = scalar_select %p143, %s14, 1
      %s145 = smul.addr %s144, 2
      %s146 = smul.addr %s145, 4
      %s147 = scalar_lea.vmem %s0, %s146
      %p148 = pneg %p35
      %p149 = pneg %p32
      %p150 = pneg %p56
      %p151 = pneg %p53
      %p152 = pneg %p77
      %p153 = pneg %p74
      %p154 = pneg %p103
      %p155 = pneg %p100
      %p156 = scmp.lt.s32.totalorder %s14, 1
      %s157 = scalar_select %p156, %s14, 1
      %s158 = smul.addr %s157, 15
      %s159 = smul.addr %s158, 8
      %s160 = scalar_lea.vmem %s3, %s159
      %p161 = scmp.lt.s32.totalorder %s14, 1
      %s162 = scalar_select %p161, %s14, 1
      %s163 = smul.addr %s162, 2
      %s164 = smul.addr %s163, 4
      %s165 = scalar_lea.vmem %s0, %s164
      %p166 = scmp.lt.s32.totalorder %s14, 1
      %s167 = scalar_select %p166, %s14, 1
      %s168 = smul.addr %s167, 15
      %s169 = smul.addr %s168, 8
      %s170 = scalar_lea.vmem %s3, %s169
      %171 = vst [vmem:[#allocation2] sm:$0xff] 0.0
      %172 = vst [vmem:[#allocation2 + $0x8] sm:$0xff] 0.0
      %173 = vst [vmem:[#allocation2 + $0x10] sm:$0xf] 0.0
      %174 = vst [vmem:[#allocation3 + $0x138] sm:$0xf0] 0.0
      %175 = vst [vmem:[#allocation3 + $0x140] sm:$0xf0] 0.0
      %176 = vst [vmem:[#allocation3 + $0x148] sm:$0xf0] 0.0
      %177 = vst [vmem:[#allocation3 + $0x150] sm:$0xff] 0.0
      %178 = vst [vmem:[#allocation3 + $0x158] sm:$0xff] 0.0
      %179 = vst [vmem:[#allocation3 + $0x160] sm:$0xff] 0.0
      %180 = vst [vmem:[#allocation3 + $0x168] sm:$0xff] 0.0
      %181 = vst [vmem:[#allocation3 + $0x170] sm:$0xff] 0.0
      %182 = vst [vmem:[#allocation3 + $0x178] sm:$0xff] 0.0
      %v183 = vld [vmem:[%s165] sm:$0xf]
      %185 = vrot.lane.b32.xlu0 %v183, 75
      %v186 = vpop.permute.xlu0 %185
      %vm188 = vcmask 740952
      %189 = vst.msk [vmem:[#allocation2] sm:$0xf] %vm188, %v186
      %v190 = vld [vmem:[%s165] sm:$0xf]
      %192 = vrot.lane.b32.xlu0 %v190, 83
      %v193 = vpop.permute.xlu0 %192
      %vm195 = vcmask 937752
      %196 = vst.msk [vmem:[#allocation2] sm:$0xf] %vm195, %v193
      %v197 = vld [vmem:[%s165] sm:$0xf]
      %199 = vrot.lane.b32.xlu0 %v197, 91
      %v200 = vpop.permute.xlu0 %199
      %v201 = vrot.slane %v200, 4
      %vm202 = vcmask 744448
      %v203 = vsel %vm202, %v201, %v200
      %vm205 = vcmask 1044440
      %vm206 = vcmask 89092
      %vm207 = vmor %vm206, %vm205
      %208 = vst.msk [vmem:[#allocation2] sm:$0xff] %vm207, %v203
      %v209 = vld [vmem:[%s165] sm:$0xf]
      %211 = vrot.lane.b32.xlu0 %v209, 99
      %v212 = vpop.permute.xlu0 %211
      %vm214 = vcmask 281752
      %215 = vst.msk [vmem:[#allocation2 + $0x4] sm:$0xf] %vm214, %v212
      %v216 = vld [vmem:[%s165] sm:$0xf]
      %218 = vrot.lane.b32.xlu0 %v216, 107
      %v219 = vpop.permute.xlu0 %218
      %vm221 = vcmask 478552
      %222 = vst.msk [vmem:[#allocation2 + $0x4] sm:$0xf] %vm221, %v219
      %v223 = vld [vmem:[%s165] sm:$0xf]
      %225 = vrot.lane.b32.xlu0 %v223, 115
      %v226 = vpop.permute.xlu0 %225
      %vm228 = vcmask 675352
      %229 = vst.msk [vmem:[#allocation2 + $0x4] sm:$0xf] %vm228, %v226
      %v230 = vld [vmem:[%s165] sm:$0xf]
      %232 = vrot.lane.b32.xlu0 %v230, 123
      %v233 = vpop.permute.xlu0 %232
      %vm235 = vcmask 872152
      %236 = vst.msk [vmem:[#allocation2 + $0x4] sm:$0xf] %vm235, %v233
      %v237 = vld [vmem:[%s165] sm:$0xf]
      %239 = vrot.lane.b32.xlu0 %v237, 3
      %v240 = vpop.permute.xlu0 %239
      %v241 = vrot.slane %v240, 4
      %vm242 = vcmask 23552
      %v243 = vsel %vm242, %v241, %v240
      %vm245 = vcmask 1044376
      %vm246 = vcmask 23556
      %vm247 = vmor %vm246, %vm245
      %248 = vst.msk [vmem:[#allocation2 + $0x4] sm:$0xff] %vm247, %v243
      %v249 = vld [vmem:[%s165 + $0x4] sm:$0xf]
      %251 = vrot.lane.b32.xlu0 %v249, 11
      %v252 = vpop.permute.xlu0 %251
      %vm254 = vcmask 216152
      %255 = vst.msk [vmem:[#allocation2 + $0x8] sm:$0xf] %vm254, %v252
      %v256 = vld [vmem:[%s165 + $0x4] sm:$0xf]
      %258 = vrot.lane.b32.xlu0 %v256, 19
      %v259 = vpop.permute.xlu0 %258
      %vm261 = vcmask 412952
      %262 = vst.msk [vmem:[#allocation2 + $0x8] sm:$0xf] %vm261, %v259
      %v263 = vld [vmem:[%s165 + $0x4] sm:$0xf]
      %265 = vrot.lane.b32.xlu0 %v263, 27
      %v266 = vpop.permute.xlu0 %265
      %vm268 = vcmask 609752
      %269 = vst.msk [vmem:[#allocation2 + $0x8] sm:$0xf] %vm268, %v266
      %v270 = vld [vmem:[%s165 + $0x4] sm:$0xf]
      %272 = vrot.lane.b32.xlu0 %v270, 35
      %v273 = vpop.permute.xlu0 %272
      %vm275 = vcmask 806552
      %276 = vst.msk [vmem:[#allocation2 + $0x8] sm:$0xf] %vm275, %v273
      %v277 = vld [vmem:[%s165 + $0x4] sm:$0xf]
      %279 = vrot.lane.b32.xlu0 %v277, 43
      %v280 = vpop.permute.xlu0 %279
      %vm282 = vcmask 1003352
      %283 = vst.msk [vmem:[#allocation2 + $0x8] sm:$0xf] %vm282, %v280
      %v284 = vld [vmem:[%s165 + $0x4] sm:$0xf]
      %286 = vrot.lane.b32.xlu0 %v284, 51
      %v287 = vpop.permute.xlu0 %286
      %vm289 = vcmask 150552
      %290 = vst.msk [vmem:[#allocation2 + $0xc] sm:$0xf] %vm289, %v287
      %v291 = vld [vmem:[%s165 + $0x4] sm:$0xf]
      %293 = vrot.lane.b32.xlu0 %v291, 59
      %v294 = vpop.permute.xlu0 %293
      %vm296 = vcmask 347352
      %297 = vst.msk [vmem:[#allocation2 + $0xc] sm:$0xf] %vm296, %v294
      %v298 = vld [vmem:[%s165 + $0x4] sm:$0xf]
      %300 = vrot.lane.b32.xlu0 %v298, 67
      %v301 = vpop.permute.xlu0 %300
      %vm303 = vcmask 544152
      %304 = vst.msk [vmem:[#allocation2 + $0xc] sm:$0xf] %vm303, %v301
      %v305 = vld [vmem:[#allocation2] sm:$0xff]
      %v306 = vld [vmem:[#allocation2 + $0x8] sm:$0xff]
      %309 = vst [vmem:[#allocation1] ss:$2 sm:$0xff] %v305
      %s310 = scalar_lea.vmem [#allocation1], 16
      %311 = vst [vmem:[%s310] ss:$2 sm:$0xff] %v306
      %v312 = vld.sshfl [vmem:[#allocation1] sm:$0xff pattern:$0x75316420]
      %v313 = vld.sshfl [vmem:[#allocation1 + $0x8] sm:$0xff pattern:$0x75316420]
      %v314 = vld.sshfl [vmem:[#allocation1 + $0x10] sm:$0xff pattern:$0x75316420]
      %v315 = vld.sshfl [vmem:[#allocation1 + $0x18] sm:$0xff pattern:$0x75316420]
      %s320 = scalar_lea.vmem [#allocation1], 1
      %321 = vst [vmem:[%s320] ss:$2 sm:$0xff] %v305
      %s322 = scalar_lea.vmem [#allocation1], 17
      %323 = vst [vmem:[%s322] ss:$2 sm:$0xff] %v306
      %v324 = vld.sshfl [vmem:[#allocation1] sm:$0xff pattern:$0x75316420]
      %v325 = vld.sshfl [vmem:[#allocation1 + $0x8] sm:$0xff pattern:$0x75316420]
      %v326 = vld.sshfl [vmem:[#allocation1 + $0x10] sm:$0xff pattern:$0x75316420]
      %v327 = vld.sshfl [vmem:[#allocation1 + $0x18] sm:$0xff pattern:$0x75316420]
      %328 = vrot.lane.b32.xlu0 %v324, 127
      %v329 = vpop.permute.xlu0 %328
      %330 = vrot.lane.b32.xlu0 %v325, 127
      %v331 = vpop.permute.xlu0 %330
      %332 = vrot.lane.b32.xlu0 %v326, 127
      %v333 = vpop.permute.xlu0 %332
      %334 = vrot.lane.b32.xlu0 %v327, 127
      %v335 = vpop.permute.xlu0 %334
      %vm336 = vcmask 1039360
      %v337 = vsel %vm336, %v329, %v331
      %v338 = vsel %vm336, %v331, %v333
      %v339 = vsel %vm336, %v333, %v335
      %vm344 = vcmask 1043456
      %v345 = vsel %vm344, %v312, %v337
      %v346 = vsel %vm344, %v313, %v338
      %v347 = vsel %vm344, %v314, %v339
      %v348 = vsel %vm344, %v315, %v335
      %353 = vrot.lane.b32.xlu0 %v345, 78
      %v354 = vpop.permute.xlu0 %353
      %355 = vrot.lane.b32.xlu0 %v346, 78
      %v356 = vpop.permute.xlu0 %355
      %357 = vrot.lane.b32.xlu0 %v347, 78
      %v358 = vpop.permute.xlu0 %357
      %359 = vrot.lane.b32.xlu0 %v348, 78
      %v360 = vpop.permute.xlu0 %359
      %vm361 = vcmask 637952
      %v362 = vsel %vm361, %v354, %v356
      %v363 = vsel %vm361, %v356, %v358
      %v364 = vsel %vm361, %v358, %v360
      %368 = vst [vmem:[#allocation3] sm:$0xff] %v362
      %369 = vst [vmem:[#allocation3 + $0x8] sm:$0xff] %v363
      %370 = vst [vmem:[#allocation3 + $0x10] sm:$0xff] %v364
      %v371 = vld [vmem:[#allocation2] sm:$0xff]
      %v372 = vld [vmem:[#allocation2 + $0x8] sm:$0xff]
      %375 = vst [vmem:[#allocation1] ss:$2 sm:$0xff] %v371
      %s376 = scalar_lea.vmem [#allocation1], 16
      %377 = vst [vmem:[%s376] ss:$2 sm:$0xff] %v372
      %v378 = vld.sshfl [vmem:[#allocation1] sm:$0xff pattern:$0x75316420]
      %v379 = vld.sshfl [vmem:[#allocation1 + $0x8] sm:$0xff pattern:$0x75316420]
      %v380 = vld.sshfl [vmem:[#allocation1 + $0x10] sm:$0xff pattern:$0x75316420]
      %v381 = vld.sshfl [vmem:[#allocation1 + $0x18] sm:$0xff pattern:$0x75316420]
      %s386 = scalar_lea.vmem [#allocation1], 1
      %387 = vst [vmem:[%s386] ss:$2 sm:$0xff] %v371
      %s388 = scalar_lea.vmem [#allocation1], 17
      %389 = vst [vmem:[%s388] ss:$2 sm:$0xff] %v372
      %v390 = vld.sshfl [vmem:[#allocation1] sm:$0xff pattern:$0x75316420]
      %v391 = vld.sshfl [vmem:[#allocation1 + $0x8] sm:$0xff pattern:$0x75316420]
      %v392 = vld.sshfl [vmem:[#allocation1 + $0x10] sm:$0xff pattern:$0x75316420]
      %v393 = vld.sshfl [vmem:[#allocation1 + $0x18] sm:$0xff pattern:$0x75316420]
      %394 = vrot.lane.b32.xlu0 %v390, 106
      %v395 = vpop.permute.xlu0 %394
      %396 = vrot.lane.b32.xlu0 %v391, 106
      %v397 = vpop.permute.xlu0 %396
      %398 = vrot.lane.b32.xlu0 %v392, 106
      %v399 = vpop.permute.xlu0 %398
      %400 = vrot.lane.b32.xlu0 %v393, 106
      %v401 = vpop.permute.xlu0 %400
      %vm402 = vcmask 867328
      %v403 = vsel %vm402, %v395, %v397
      %v404 = vsel %vm402, %v397, %v399
      %v405 = vsel %vm402, %v399, %v401
      %v410 = vsel %vm344, %v378, %v403
      %v411 = vsel %vm344, %v379, %v404
      %v412 = vsel %vm344, %v380, %v405
      %v413 = vsel %vm344, %v381, %v401
      %418 = vrot.lane.b32.xlu0 %v410, 76
      %v419 = vpop.permute.xlu0 %418
      %420 = vrot.lane.b32.xlu0 %v411, 76
      %v421 = vpop.permute.xlu0 %420
      %422 = vrot.lane.b32.xlu0 %v412, 76
      %v423 = vpop.permute.xlu0 %422
      %424 = vrot.lane.b32.xlu0 %v413, 76
      %v425 = vpop.permute.xlu0 %424
      %vm426 = vcmask 621568
      %v427 = vsel %vm426, %v419, %v421
      %v428 = vsel %vm426, %v421, %v423
      %v429 = vsel %vm426, %v423, %v425
      %433 = vst [vmem:[#allocation3 + $0x18] sm:$0xff] %v427
      %434 = vst [vmem:[#allocation3 + $0x20] sm:$0xff] %v428
      %435 = vst [vmem:[#allocation3 + $0x28] sm:$0xff] %v429
      %v436 = vld [vmem:[#allocation2] sm:$0xff]
      %v437 = vld [vmem:[#allocation2 + $0x8] sm:$0xff]
      %440 = vst [vmem:[#allocation1] ss:$2 sm:$0xff] %v436
      %s441 = scalar_lea.vmem [#allocation1], 16
      %442 = vst [vmem:[%s441] ss:$2 sm:$0xff] %v437
      %v443 = vld.sshfl [vmem:[#allocation1] sm:$0xff pattern:$0x75316420]
      %v444 = vld.sshfl [vmem:[#allocation1 + $0x8] sm:$0xff pattern:$0x75316420]
      %v445 = vld.sshfl [vmem:[#allocation1 + $0x10] sm:$0xff pattern:$0x75316420]
      %v446 = vld.sshfl [vmem:[#allocation1 + $0x18] sm:$0xff pattern:$0x75316420]
      %s451 = scalar_lea.vmem [#allocation1], 1
      %452 = vst [vmem:[%s451] ss:$2 sm:$0xff] %v436
      %s453 = scalar_lea.vmem [#allocation1], 17
      %454 = vst [vmem:[%s453] ss:$2 sm:$0xff] %v437
      %v455 = vld.sshfl [vmem:[#allocation1] sm:$0xff pattern:$0x75316420]
      %v456 = vld.sshfl [vmem:[#allocation1 + $0x8] sm:$0xff pattern:$0x75316420]
      %v457 = vld.sshfl [vmem:[#allocation1 + $0x10] sm:$0xff pattern:$0x75316420]
      %v458 = vld.sshfl [vmem:[#allocation1 + $0x18] sm:$0xff pattern:$0x75316420]
      %459 = vrot.lane.b32.xlu0 %v455, 127
      %v460 = vpop.permute.xlu0 %459
      %461 = vrot.lane.b32.xlu0 %v456, 127
      %v462 = vpop.permute.xlu0 %461
      %463 = vrot.lane.b32.xlu0 %v457, 127
      %v464 = vpop.permute.xlu0 %463
      %465 = vrot.lane.b32.xlu0 %v458, 127
      %v466 = vpop.permute.xlu0 %465
      %v467 = vsel %vm336, %v460, %v462
      %v468 = vsel %vm336, %v462, %v464
      %v469 = vsel %vm336, %v464, %v466
      %v474 = vsel %vm344, %v443, %v467
      %v475 = vsel %vm344, %v444, %v468
      %v476 = vsel %vm344, %v445, %v469
      %v477 = vsel %vm344, %v446, %v466
      %482 = vrot.lane.b32.xlu0 %v474, 53
      %v483 = vpop.permute.xlu0 %482
      %484 = vrot.lane.b32.xlu0 %v475, 53
      %v485 = vpop.permute.xlu0 %484
      %486 = vrot.lane.b32.xlu0 %v476, 53
      %v487 = vpop.permute.xlu0 %486
      %488 = vrot.lane.b32.xlu0 %v477, 53
      %v489 = vpop.permute.xlu0 %488
      %vm490 = vcmask 433152
      %v491 = vsel %vm490, %v483, %v485
      %v492 = vsel %vm490, %v485, %v487
      %v493 = vsel %vm490, %v487, %v489
      %497 = vst [vmem:[#allocation3 + $0x30] sm:$0xff] %v491
      %498 = vst [vmem:[#allocation3 + $0x38] sm:$0xff] %v492
      %499 = vst [vmem:[#allocation3 + $0x40] sm:$0xff] %v493
      %v500 = vld [vmem:[#allocation2] sm:$0xff]
      %v501 = vld [vmem:[#allocation2 + $0x8] sm:$0xff]
      %504 = vst [vmem:[#allocation1] ss:$2 sm:$0xff] %v500
      %s505 = scalar_lea.vmem [#allocation1], 16
      %506 = vst [vmem:[%s505] ss:$2 sm:$0xff] %v501
      %v507 = vld.sshfl [vmem:[#allocation1] sm:$0xff pattern:$0x75316420]
      %v508 = vld.sshfl [vmem:[#allocation1 + $0x8] sm:$0xff pattern:$0x75316420]
      %v509 = vld.sshfl [vmem:[#allocation1 + $0x10] sm:$0xff pattern:$0x75316420]
      %v510 = vld.sshfl [vmem:[#allocation1 + $0x18] sm:$0xff pattern:$0x75316420]
      %s515 = scalar_lea.vmem [#allocation1], 1
      %516 = vst [vmem:[%s515] ss:$2 sm:$0xff] %v500
      %s517 = scalar_lea.vmem [#allocation1], 17
      %518 = vst [vmem:[%s517] ss:$2 sm:$0xff] %v501
      %v519 = vld.sshfl [vmem:[#allocation1] sm:$0xff pattern:$0x75316420]
      %v520 = vld.sshfl [vmem:[#allocation1 + $0x8] sm:$0xff pattern:$0x75316420]
      %v521 = vld.sshfl [vmem:[#allocation1 + $0x10] sm:$0xff pattern:$0x75316420]
      %v522 = vld.sshfl [vmem:[#allocation1 + $0x18] sm:$0xff pattern:$0x75316420]
      %523 = vrot.lane.b32.xlu0 %v519, 127
      %v524 = vpop.permute.xlu0 %523
      %525 = vrot.lane.b32.xlu0 %v520, 127
      %v526 = vpop.permute.xlu0 %525
      %527 = vrot.lane.b32.xlu0 %v521, 127
      %v528 = vpop.permute.xlu0 %527
      %529 = vrot.lane.b32.xlu0 %v522, 127
      %v530 = vpop.permute.xlu0 %529
      %v531 = vsel %vm336, %v524, %v526
      %v532 = vsel %vm336, %v526, %v528
      %v533 = vsel %vm336, %v528, %v530
      %v538 = vsel %vm344, %v507, %v531
      %v539 = vsel %vm344, %v508, %v532
      %v540 = vsel %vm344, %v509, %v533
      %v541 = vsel %vm344, %v510, %v530
      %546 = vrot.lane.b32.xlu0 %v538, 30
      %v547 = vpop.permute.xlu0 %546
      %548 = vrot.lane.b32.xlu0 %v539, 30
      %v549 = vpop.permute.xlu0 %548
      %550 = vrot.lane.b32.xlu0 %v540, 30
      %v551 = vpop.permute.xlu0 %550
      %552 = vrot.lane.b32.xlu0 %v541, 30
      %v553 = vpop.permute.xlu0 %552
      %vm554 = vcmask 244736
      %v555 = vsel %vm554, %v547, %v549
      %v556 = vsel %vm554, %v549, %v551
      %v557 = vsel %vm554, %v551, %v553
      %561 = vst [vmem:[#allocation3 + $0x48] sm:$0xff] %v555
      %562 = vst [vmem:[#allocation3 + $0x50] sm:$0xff] %v556
      %563 = vst [vmem:[#allocation3 + $0x58] sm:$0xff] %v557
      %v564 = vld [vmem:[#allocation2] sm:$0xff]
      %v565 = vld [vmem:[#allocation2 + $0x8] sm:$0xff]
      %568 = vst [vmem:[#allocation1] ss:$2 sm:$0xff] %v564
      %s569 = scalar_lea.vmem [#allocation1], 16
      %570 = vst [vmem:[%s569] ss:$2 sm:$0xff] %v565
      %v571 = vld.sshfl [vmem:[#allocation1] sm:$0xff pattern:$0x75316420]
      %v572 = vld.sshfl [vmem:[#allocation1 + $0x8] sm:$0xff pattern:$0x75316420]
      %v573 = vld.sshfl [vmem:[#allocation1 + $0x10] sm:$0xff pattern:$0x75316420]
      %v574 = vld.sshfl [vmem:[#allocation1 + $0x18] sm:$0xff pattern:$0x75316420]
      %s579 = scalar_lea.vmem [#allocation1], 1
      %580 = vst [vmem:[%s579] ss:$2 sm:$0xff] %v564
      %s581 = scalar_lea.vmem [#allocation1], 17
      %582 = vst [vmem:[%s581] ss:$2 sm:$0xff] %v565
      %v583 = vld.sshfl [vmem:[#allocation1] sm:$0xff pattern:$0x75316420]
      %v584 = vld.sshfl [vmem:[#allocation1 + $0x8] sm:$0xff pattern:$0x75316420]
      %v585 = vld.sshfl [vmem:[#allocation1 + $0x10] sm:$0xff pattern:$0x75316420]
      %v586 = vld.sshfl [vmem:[#allocation1 + $0x18] sm:$0xff pattern:$0x75316420]
      %587 = vrot.lane.b32.xlu0 %v583, 75
      %v588 = vpop.permute.xlu0 %587
      %589 = vrot.lane.b32.xlu0 %v584, 75
      %v590 = vpop.permute.xlu0 %589
      %591 = vrot.lane.b32.xlu0 %v585, 75
      %v592 = vpop.permute.xlu0 %591
      %593 = vrot.lane.b32.xlu0 %v586, 75
      %v594 = vpop.permute.xlu0 %593
      %vm595 = vcmask 613376
      %v596 = vsel %vm595, %v588, %v590
      %v597 = vsel %vm595, %v590, %v592
      %v598 = vsel %vm595, %v592, %v594
      %v603 = vsel %vm344, %v571, %v588
      %v604 = vsel %vm344, %v572, %v596
      %v605 = vsel %vm344, %v573, %v597
      %v606 = vsel %vm344, %v574, %v598
      %611 = vrot.lane.b32.xlu0 %v603, 28
      %v612 = vpop.permute.xlu0 %611
      %613 = vrot.lane.b32.xlu0 %v604, 28
      %v614 = vpop.permute.xlu0 %613
      %615 = vrot.lane.b32.xlu0 %v605, 28
      %v616 = vpop.permute.xlu0 %615
      %617 = vrot.lane.b32.xlu0 %v606, 28
      %v618 = vpop.permute.xlu0 %617
      %vm619 = vcmask 228352
      %v620 = vsel %vm619, %v612, %v614
      %v621 = vsel %vm619, %v614, %v616
      %v622 = vsel %vm619, %v616, %v618
      %626 = vst [vmem:[#allocation3 + $0x60] sm:$0xff] %v620
      %627 = vst [vmem:[#allocation3 + $0x68] sm:$0xff] %v621
      %628 = vst [vmem:[#allocation3 + $0x70] sm:$0xff] %v622
      %v629 = vld [vmem:[#allocation2] sm:$0xff]
      %v630 = vld [vmem:[#allocation2 + $0x8] sm:$0xff]
      %633 = vst [vmem:[#allocation1] ss:$2 sm:$0xff] %v629
      %s634 = scalar_lea.vmem [#allocation1], 16
      %635 = vst [vmem:[%s634] ss:$2 sm:$0xff] %v630
      %v636 = vld.sshfl [vmem:[#allocation1] sm:$0xff pattern:$0x75316420]
      %v637 = vld.sshfl [vmem:[#allocation1 + $0x8] sm:$0xff pattern:$0x75316420]
      %v638 = vld.sshfl [vmem:[#allocation1 + $0x10] sm:$0xff pattern:$0x75316420]
      %v639 = vld.sshfl [vmem:[#allocation1 + $0x18] sm:$0xff pattern:$0x75316420]
      %s644 = scalar_lea.vmem [#allocation1], 1
      %645 = vst [vmem:[%s644] ss:$2 sm:$0xff] %v629
      %s646 = scalar_lea.vmem [#allocation1], 17
      %647 = vst [vmem:[%s646] ss:$2 sm:$0xff] %v630
      %v648 = vld.sshfl [vmem:[#allocation1] sm:$0xff pattern:$0x75316420]
      %v649 = vld.sshfl [vmem:[#allocation1 + $0x8] sm:$0xff pattern:$0x75316420]
      %v650 = vld.sshfl [vmem:[#allocation1 + $0x10] sm:$0xff pattern:$0x75316420]
      %v651 = vld.sshfl [vmem:[#allocation1 + $0x18] sm:$0xff pattern:$0x75316420]
      %652 = vrot.lane.b32.xlu0 %v648, 126
      %v653 = vpop.permute.xlu0 %652
      %654 = vrot.lane.b32.xlu0 %v649, 126
      %v655 = vpop.permute.xlu0 %654
      %656 = vrot.lane.b32.xlu0 %v650, 126
      %v657 = vpop.permute.xlu0 %656
      %658 = vrot.lane.b32.xlu0 %v651, 126
      %v659 = vpop.permute.xlu0 %658
      %vm660 = vcmask 1031168
      %v661 = vsel %vm660, %v653, %v655
      %v662 = vsel %vm660, %v655, %v657
      %v663 = vsel %vm660, %v657, %v659
      %v668 = vsel %vm344, %v636, %v661
      %v669 = vsel %vm344, %v637, %v662
      %v670 = vsel %vm344, %v638, %v663
      %v671 = vsel %vm344, %v639, %v659
      %676 = vrot.lane.b32.xlu0 %v668, 101
      %v677 = vpop.permute.xlu0 %676
      %678 = vrot.lane.b32.xlu0 %v669, 101
      %v679 = vpop.permute.xlu0 %678
      %680 = vrot.lane.b32.xlu0 %v670, 101
      %v681 = vpop.permute.xlu0 %680
      %682 = vrot.lane.b32.xlu0 %v671, 101
      %v683 = vpop.permute.xlu0 %682
      %vm684 = vcmask 826368
      %v685 = vsel %vm684, %v677, %v679
      %v686 = vsel %vm684, %v679, %v681
      %v687 = vsel %vm684, %v681, %v683
      %691 = vst [vmem:[#allocation3 + $0x78] sm:$0xff] %v685
      %692 = vst [vmem:[#allocation3 + $0x80] sm:$0xff] %v686
      %693 = vst [vmem:[#allocation3 + $0x88] sm:$0xff] %v687
      %v694 = vld [vmem:[#allocation2] sm:$0xff]
      %v695 = vld [vmem:[#allocation2 + $0x8] sm:$0xff]
      %698 = vst [vmem:[#allocation1] ss:$2 sm:$0xff] %v694
      %s699 = scalar_lea.vmem [#allocation1], 16
      %700 = vst [vmem:[%s699] ss:$2 sm:$0xff] %v695
      %v701 = vld.sshfl [vmem:[#allocation1] sm:$0xff pattern:$0x75316420]
      %v702 = vld.sshfl [vmem:[#allocation1 + $0x8] sm:$0xff pattern:$0x75316420]
      %v703 = vld.sshfl [vmem:[#allocation1 + $0x10] sm:$0xff pattern:$0x75316420]
      %v704 = vld.sshfl [vmem:[#allocation1 + $0x18] sm:$0xff pattern:$0x75316420]
      %s709 = scalar_lea.vmem [#allocation1], 1
      %710 = vst [vmem:[%s709] ss:$2 sm:$0xff] %v694
      %s711 = scalar_lea.vmem [#allocation1], 17
      %712 = vst [vmem:[%s711] ss:$2 sm:$0xff] %v695
      %v713 = vld.sshfl [vmem:[#allocation1] sm:$0xff pattern:$0x75316420]
      %v714 = vld.sshfl [vmem:[#allocation1 + $0x8] sm:$0xff pattern:$0x75316420]
      %v715 = vld.sshfl [vmem:[#allocation1 + $0x10] sm:$0xff pattern:$0x75316420]
      %v716 = vld.sshfl [vmem:[#allocation1 + $0x18] sm:$0xff pattern:$0x75316420]
      %717 = vrot.lane.b32.xlu0 %v713, 126
      %v718 = vpop.permute.xlu0 %717
      %719 = vrot.lane.b32.xlu0 %v714, 126
      %v720 = vpop.permute.xlu0 %719
      %721 = vrot.lane.b32.xlu0 %v715, 126
      %v722 = vpop.permute.xlu0 %721
      %723 = vrot.lane.b32.xlu0 %v716, 126
      %v724 = vpop.permute.xlu0 %723
      %v725 = vsel %vm660, %v718, %v720
      %v726 = vsel %vm660, %v720, %v722
      %v727 = vsel %vm660, %v722, %v724
      %v732 = vsel %vm344, %v701, %v725
      %v733 = vsel %vm344, %v702, %v726
      %v734 = vsel %vm344, %v703, %v727
      %v735 = vsel %vm344, %v704, %v724
      %740 = vrot.lane.b32.xlu0 %v732, 55
      %v741 = vpop.permute.xlu0 %740
      %742 = vrot.lane.b32.xlu0 %v733, 55
      %v743 = vpop.permute.xlu0 %742
      %744 = vrot.lane.b32.xlu0 %v734, 55
      %v745 = vpop.permute.xlu0 %744
      %746 = vrot.lane.b32.xlu0 %v735, 55
      %v747 = vpop.permute.xlu0 %746
      %vm748 = vcmask 449536
      %v749 = vsel %vm748, %v741, %v743
      %v750 = vsel %vm748, %v743, %v745
      %v751 = vsel %vm748, %v745, %v747
      %755 = vst [vmem:[#allocation3 + $0x90] sm:$0xff] %v749
      %756 = vst [vmem:[#allocation3 + $0x98] sm:$0xff] %v750
      %757 = vst [vmem:[#allocation3 + $0xa0] sm:$0xff] %v751
      %v758 = vld [vmem:[#allocation2] sm:$0xff]
      %v759 = vld [vmem:[#allocation2 + $0x8] sm:$0xff]
      %762 = vst [vmem:[#allocation1] ss:$2 sm:$0xff] %v758
      %s763 = scalar_lea.vmem [#allocation1], 16
      %764 = vst [vmem:[%s763] ss:$2 sm:$0xff] %v759
      %v765 = vld.sshfl [vmem:[#allocation1] sm:$0xff pattern:$0x75316420]
      %v766 = vld.sshfl [vmem:[#allocation1 + $0x8] sm:$0xff pattern:$0x75316420]
      %v767 = vld.sshfl [vmem:[#allocation1 + $0x10] sm:$0xff pattern:$0x75316420]
      %v768 = vld.sshfl [vmem:[#allocation1 + $0x18] sm:$0xff pattern:$0x75316420]
      %s773 = scalar_lea.vmem [#allocation1], 1
      %774 = vst [vmem:[%s773] ss:$2 sm:$0xff] %v758
      %s775 = scalar_lea.vmem [#allocation1], 17
      %776 = vst [vmem:[%s775] ss:$2 sm:$0xff] %v759
      %v777 = vld.sshfl [vmem:[#allocation1] sm:$0xff pattern:$0x75316420]
      %v778 = vld.sshfl [vmem:[#allocation1 + $0x8] sm:$0xff pattern:$0x75316420]
      %v779 = vld.sshfl [vmem:[#allocation1 + $0x10] sm:$0xff pattern:$0x75316420]
      %v780 = vld.sshfl [vmem:[#allocation1 + $0x18] sm:$0xff pattern:$0x75316420]
      %781 = vrot.lane.b32.xlu0 %v777, 84
      %v782 = vpop.permute.xlu0 %781
      %783 = vrot.lane.b32.xlu0 %v778, 84
      %v784 = vpop.permute.xlu0 %783
      %785 = vrot.lane.b32.xlu0 %v779, 84
      %v786 = vpop.permute.xlu0 %785
      %787 = vrot.lane.b32.xlu0 %v780, 84
      %v788 = vpop.permute.xlu0 %787
      %vm789 = vcmask 687104
      %v790 = vsel %vm789, %v782, %v784
      %v791 = vsel %vm789, %v784, %v786
      %v792 = vsel %vm789, %v786, %v788
      %v797 = vsel %vm344, %v765, %v790
      %v798 = vsel %vm344, %v766, %v791
      %v799 = vsel %vm344, %v767, %v792
      %v800 = vsel %vm344, %v768, %v788
      %805 = vrot.lane.b32.xlu0 %v797, 51
      %v806 = vpop.permute.xlu0 %805
      %807 = vrot.lane.b32.xlu0 %v798, 51
      %v808 = vpop.permute.xlu0 %807
      %809 = vrot.lane.b32.xlu0 %v799, 51
      %v810 = vpop.permute.xlu0 %809
      %811 = vrot.lane.b32.xlu0 %v800, 51
      %v812 = vpop.permute.xlu0 %811
      %vm813 = vcmask 416768
      %v814 = vsel %vm813, %v806, %v808
      %v815 = vsel %vm813, %v808, %v810
      %v816 = vsel %vm813, %v810, %v812
      %820 = vst [vmem:[#allocation3 + $0xa8] sm:$0xff] %v814
      %821 = vst [vmem:[#allocation3 + $0xb0] sm:$0xff] %v815
      %822 = vst [vmem:[#allocation3 + $0xb8] sm:$0xff] %v816
      %v823 = vld [vmem:[#allocation2] sm:$0xff]
      %v824 = vld [vmem:[#allocation2 + $0x8] sm:$0xff]
      %827 = vst [vmem:[#allocation1] ss:$2 sm:$0xff] %v823
      %s828 = scalar_lea.vmem [#allocation1], 16
      %829 = vst [vmem:[%s828] ss:$2 sm:$0xff] %v824
      %v830 = vld.sshfl [vmem:[#allocation1] sm:$0xff pattern:$0x75316420]
      %v831 = vld.sshfl [vmem:[#allocation1 + $0x8] sm:$0xff pattern:$0x75316420]
      %v832 = vld.sshfl [vmem:[#allocation1 + $0x10] sm:$0xff pattern:$0x75316420]
      %v833 = vld.sshfl [vmem:[#allocation1 + $0x18] sm:$0xff pattern:$0x75316420]
      %s838 = scalar_lea.vmem [#allocation1], 1
      %839 = vst [vmem:[%s838] ss:$2 sm:$0xff] %v823
      %s840 = scalar_lea.vmem [#allocation1], 17
      %841 = vst [vmem:[%s840] ss:$2 sm:$0xff] %v824
      %v842 = vld.sshfl [vmem:[#allocation1] sm:$0xff pattern:$0x75316420]
      %v843 = vld.sshfl [vmem:[#allocation1 + $0x8] sm:$0xff pattern:$0x75316420]
      %v844 = vld.sshfl [vmem:[#allocation1 + $0x10] sm:$0xff pattern:$0x75316420]
      %v845 = vld.sshfl [vmem:[#allocation1 + $0x18] sm:$0xff pattern:$0x75316420]
      %846 = vrot.lane.b32.xlu0 %v842, 126
      %v847 = vpop.permute.xlu0 %846
      %848 = vrot.lane.b32.xlu0 %v843, 126
      %v849 = vpop.permute.xlu0 %848
      %850 = vrot.lane.b32.xlu0 %v844, 126
      %v851 = vpop.permute.xlu0 %850
      %852 = vrot.lane.b32.xlu0 %v845, 126
      %v853 = vpop.permute.xlu0 %852
      %v854 = vsel %vm660, %v847, %v849
      %v855 = vsel %vm660, %v849, %v851
      %v856 = vsel %vm660, %v851, %v853
      %v861 = vsel %vm344, %v830, %v854
      %v862 = vsel %vm344, %v831, %v855
      %v863 = vsel %vm344, %v832, %v856
      %v864 = vsel %vm344, %v833, %v853
      %869 = vrot.lane.b32.xlu0 %v861, 5
      %v870 = vpop.permute.xlu0 %869
      %871 = vrot.lane.b32.xlu0 %v862, 5
      %v872 = vpop.permute.xlu0 %871
      %873 = vrot.lane.b32.xlu0 %v863, 5
      %v874 = vpop.permute.xlu0 %873
      %875 = vrot.lane.b32.xlu0 %v864, 5
      %v876 = vpop.permute.xlu0 %875
      %vm877 = vcmask 39936
      %v878 = vsel %vm877, %v870, %v872
      %v879 = vsel %vm877, %v872, %v874
      %v880 = vsel %vm877, %v874, %v876
      %884 = vst [vmem:[#allocation3 + $0xc0] sm:$0xff] %v878
      %885 = vst [vmem:[#allocation3 + $0xc8] sm:$0xff] %v879
      %886 = vst [vmem:[#allocation3 + $0xd0] sm:$0xff] %v880
      %v887 = vld [vmem:[#allocation2] sm:$0xff]
      %v888 = vld [vmem:[#allocation2 + $0x8] sm:$0xf]
      %v889 = vld [vmem:[#allocation2 + $0x8] sm:$0xff]
      %892 = vst [vmem:[#allocation1] ss:$2 sm:$0xff] %v887
      %s893 = scalar_lea.vmem [#allocation1], 16
      %894 = vst [vmem:[%s893] ss:$2 sm:$0xff] %v888
      %v895 = vld.sshfl [vmem:[#allocation1] sm:$0xff pattern:$0x75316420]
      %v896 = vld.sshfl [vmem:[#allocation1 + $0x8] sm:$0xff pattern:$0x75316420]
      %v897 = vld.sshfl [vmem:[#allocation1 + $0x10] sm:$0xff pattern:$0x75316420]
      %s902 = scalar_lea.vmem [#allocation1], 1
      %903 = vst [vmem:[%s902] ss:$2 sm:$0xff] %v887
      %s904 = scalar_lea.vmem [#allocation1], 17
      %905 = vst [vmem:[%s904] ss:$2 sm:$0xff] %v889
      %v906 = vld.sshfl [vmem:[#allocation1] sm:$0xff pattern:$0x75316420]
      %v907 = vld.sshfl [vmem:[#allocation1 + $0x8] sm:$0xff pattern:$0x75316420]
      %v908 = vld.sshfl [vmem:[#allocation1 + $0x10] sm:$0xff pattern:$0x75316420]
      %v909 = vld.sshfl [vmem:[#allocation1 + $0x18] sm:$0xff pattern:$0x75316420]
      %910 = vrot.lane.b32.xlu0 %v906, 125
      %v911 = vpop.permute.xlu0 %910
      %912 = vrot.lane.b32.xlu0 %v907, 125
      %v913 = vpop.permute.xlu0 %912
      %914 = vrot.lane.b32.xlu0 %v908, 125
      %v915 = vpop.permute.xlu0 %914
      %916 = vrot.lane.b32.xlu0 %v909, 125
      %v917 = vpop.permute.xlu0 %916
      %vm918 = vcmask 1022976
      %v919 = vsel %vm918, %v911, %v913
      %v920 = vsel %vm918, %v913, %v915
      %v921 = vsel %vm918, %v915, %v917
      %v925 = vsel %vm344, %v895, %v919
      %v926 = vsel %vm344, %v896, %v920
      %v927 = vsel %vm344, %v897, %v921
      %928 = vst [vmem:[#allocation3 + $0xd8] sm:$0xff] %v925
      %929 = vst [vmem:[#allocation3 + $0xe0] sm:$0xff] %v926
      %930 = vst [vmem:[#allocation3 + $0xe8] sm:$0xff] %v927
      %v931 = vld [vmem:[#allocation2] sm:$0xff]
      %v932 = vld [vmem:[#allocation2 + $0x8] sm:$0xff]
      %935 = vst [vmem:[#allocation1] ss:$2 sm:$0xff] %v931
      %s936 = scalar_lea.vmem [#allocation1], 16
      %937 = vst [vmem:[%s936] ss:$2 sm:$0xff] %v932
      %v938 = vld.sshfl [vmem:[#allocation1] sm:$0xff pattern:$0x75316420]
      %v939 = vld.sshfl [vmem:[#allocation1 + $0x8] sm:$0xff pattern:$0x75316420]
      %v940 = vld.sshfl [vmem:[#allocation1 + $0x10] sm:$0xff pattern:$0x75316420]
      %v941 = vld.sshfl [vmem:[#allocation1 + $0x18] sm:$0xff pattern:$0x75316420]
      %s946 = scalar_lea.vmem [#allocation1], 1
      %947 = vst [vmem:[%s946] ss:$2 sm:$0xff] %v931
      %s948 = scalar_lea.vmem [#allocation1], 17
      %949 = vst [vmem:[%s948] ss:$2 sm:$0xff] %v932
      %v950 = vld.sshfl [vmem:[#allocation1] sm:$0xff pattern:$0x75316420]
      %v951 = vld.sshfl [vmem:[#allocation1 + $0x8] sm:$0xff pattern:$0x75316420]
      %v952 = vld.sshfl [vmem:[#allocation1 + $0x10] sm:$0xff pattern:$0x75316420]
      %v953 = vld.sshfl [vmem:[#allocation1 + $0x18] sm:$0xff pattern:$0x75316420]
      %954 = vrot.lane.b32.xlu0 %v950, 62
      %v955 = vpop.permute.xlu0 %954
      %956 = vrot.lane.b32.xlu0 %v951, 62
      %v957 = vpop.permute.xlu0 %956
      %958 = vrot.lane.b32.xlu0 %v952, 62
      %v959 = vpop.permute.xlu0 %958
      %960 = vrot.lane.b32.xlu0 %v953, 62
      %v961 = vpop.permute.xlu0 %960
      %vm962 = vcmask 506880
      %v963 = vsel %vm962, %v955, %v957
      %v964 = vsel %vm962, %v957, %v959
      %v965 = vsel %vm962, %v959, %v961
      %v970 = vsel %vm344, %v938, %v963
      %v971 = vsel %vm344, %v939, %v964
      %v972 = vsel %vm344, %v940, %v965
      %v973 = vsel %vm344, %v941, %v961
      %978 = vrot.lane.b32.xlu0 %v970, 122
      %v979 = vpop.permute.xlu0 %978
      %980 = vrot.lane.b32.xlu0 %v971, 122
      %v981 = vpop.permute.xlu0 %980
      %982 = vrot.lane.b32.xlu0 %v972, 122
      %v983 = vpop.permute.xlu0 %982
      %984 = vrot.lane.b32.xlu0 %v973, 122
      %v985 = vpop.permute.xlu0 %984
      %vm986 = vcmask 998400
      %v987 = vsel %vm986, %v979, %v981
      %v988 = vsel %vm986, %v981, %v983
      %v989 = vsel %vm986, %v983, %v985
      %993 = vst [vmem:[#allocation3 + $0xf0] sm:$0xff] %v987
      %994 = vst [vmem:[#allocation3 + $0xf8] sm:$0xff] %v988
      %995 = vst [vmem:[#allocation3 + $0x100] sm:$0xff] %v989
      %v996 = vld [vmem:[#allocation2] sm:$0xff]
      %v997 = vld [vmem:[#allocation2 + $0x8] sm:$0xff]
      %1000 = vst [vmem:[#allocation1] ss:$2 sm:$0xff] %v996
      %s1001 = scalar_lea.vmem [#allocation1], 16
      %1002 = vst [vmem:[%s1001] ss:$2 sm:$0xff] %v997
      %v1003 = vld.sshfl [vmem:[#allocation1] sm:$0xff pattern:$0x75316420]
      %v1004 = vld.sshfl [vmem:[#allocation1 + $0x8] sm:$0xff pattern:$0x75316420]
      %v1005 = vld.sshfl [vmem:[#allocation1 + $0x10] sm:$0xff pattern:$0x75316420]
      %v1006 = vld.sshfl [vmem:[#allocation1 + $0x18] sm:$0xff pattern:$0x75316420]
      %s1011 = scalar_lea.vmem [#allocation1], 1
      %1012 = vst [vmem:[%s1011] ss:$2 sm:$0xff] %v996
      %s1013 = scalar_lea.vmem [#allocation1], 17
      %1014 = vst [vmem:[%s1013] ss:$2 sm:$0xff] %v997
      %v1015 = vld.sshfl [vmem:[#allocation1] sm:$0xff pattern:$0x75316420]
      %v1016 = vld.sshfl [vmem:[#allocation1 + $0x8] sm:$0xff pattern:$0x75316420]
      %v1017 = vld.sshfl [vmem:[#allocation1 + $0x10] sm:$0xff pattern:$0x75316420]
      %v1018 = vld.sshfl [vmem:[#allocation1 + $0x18] sm:$0xff pattern:$0x75316420]
      %1019 = vrot.lane.b32.xlu0 %v1015, 125
      %v1020 = vpop.permute.xlu0 %1019
      %1021 = vrot.lane.b32.xlu0 %v1016, 125
      %v1022 = vpop.permute.xlu0 %1021
      %1023 = vrot.lane.b32.xlu0 %v1017, 125
      %v1024 = vpop.permute.xlu0 %1023
      %1025 = vrot.lane.b32.xlu0 %v1018, 125
      %v1026 = vpop.permute.xlu0 %1025
      %v1027 = vsel %vm918, %v1020, %v1022
      %v1028 = vsel %vm918, %v1022, %v1024
      %v1029 = vsel %vm918, %v1024, %v1026
      %v1034 = vsel %vm344, %v1003, %v1027
      %v1035 = vsel %vm344, %v1004, %v1028
      %v1036 = vsel %vm344, %v1005, %v1029
      %v1037 = vsel %vm344, %v1006, %v1026
      %1042 = vrot.lane.b32.xlu0 %v1034, 53
      %v1043 = vpop.permute.xlu0 %1042
      %1044 = vrot.lane.b32.xlu0 %v1035, 53
      %v1045 = vpop.permute.xlu0 %1044
      %1046 = vrot.lane.b32.xlu0 %v1036, 53
      %v1047 = vpop.permute.xlu0 %1046
      %1048 = vrot.lane.b32.xlu0 %v1037, 53
      %v1049 = vpop.permute.xlu0 %1048
      %v1050 = vsel %vm490, %v1043, %v1045
      %v1051 = vsel %vm490, %v1045, %v1047
      %v1052 = vsel %vm490, %v1047, %v1049
      %1056 = vst [vmem:[#allocation3 + $0x108] sm:$0xff] %v1050
      %1057 = vst [vmem:[#allocation3 + $0x110] sm:$0xff] %v1051
      %1058 = vst [vmem:[#allocation3 + $0x118] sm:$0xff] %v1052
      %v1059 = vld [vmem:[#allocation2 + $0x4] sm:$0xff]
      %v1060 = vld [vmem:[#allocation2 + $0xc] sm:$0xff]
      %1063 = vst [vmem:[#allocation1] ss:$2 sm:$0xff] %v1059
      %s1064 = scalar_lea.vmem [#allocation1], 16
      %1065 = vst [vmem:[%s1064] ss:$2 sm:$0xff] %v1060
      %v1066 = vld.sshfl [vmem:[#allocation1] sm:$0xff pattern:$0x75316420]
      %v1067 = vld.sshfl [vmem:[#allocation1 + $0x8] sm:$0xff pattern:$0x75316420]
      %v1068 = vld.sshfl [vmem:[#allocation1 + $0x10] sm:$0xff pattern:$0x75316420]
      %v1069 = vld.sshfl [vmem:[#allocation1 + $0x18] sm:$0xff pattern:$0x75316420]
      %s1074 = scalar_lea.vmem [#allocation1], 1
      %1075 = vst [vmem:[%s1074] ss:$2 sm:$0xff] %v1059
      %s1076 = scalar_lea.vmem [#allocation1], 17
      %1077 = vst [vmem:[%s1076] ss:$2 sm:$0xff] %v1060
      %v1078 = vld.sshfl [vmem:[#allocation1] sm:$0xff pattern:$0x75316420]
      %v1079 = vld.sshfl [vmem:[#allocation1 + $0x8] sm:$0xff pattern:$0x75316420]
      %v1080 = vld.sshfl [vmem:[#allocation1 + $0x10] sm:$0xff pattern:$0x75316420]
      %v1081 = vld.sshfl [vmem:[#allocation1 + $0x18] sm:$0xff pattern:$0x75316420]
      %1082 = vrot.lane.b32.xlu0 %v1078, 125
      %v1083 = vpop.permute.xlu0 %1082
      %1084 = vrot.lane.b32.xlu0 %v1079, 125
      %v1085 = vpop.permute.xlu0 %1084
      %1086 = vrot.lane.b32.xlu0 %v1080, 125
      %v1087 = vpop.permute.xlu0 %1086
      %1088 = vrot.lane.b32.xlu0 %v1081, 125
      %v1089 = vpop.permute.xlu0 %1088
      %v1090 = vsel %vm918, %v1083, %v1085
      %v1091 = vsel %vm918, %v1085, %v1087
      %v1092 = vsel %vm918, %v1087, %v1089
      %v1097 = vsel %vm344, %v1066, %v1090
      %v1098 = vsel %vm344, %v1067, %v1091
      %v1099 = vsel %vm344, %v1068, %v1092
      %v1100 = vsel %vm344, %v1069, %v1089
      %1105 = vrot.lane.b32.xlu0 %v1097, 112
      %v1106 = vpop.permute.xlu0 %1105
      %1107 = vrot.lane.b32.xlu0 %v1098, 112
      %v1108 = vpop.permute.xlu0 %1107
      %1109 = vrot.lane.b32.xlu0 %v1099, 112
      %v1110 = vpop.permute.xlu0 %1109
      %1111 = vrot.lane.b32.xlu0 %v1100, 112
      %v1112 = vpop.permute.xlu0 %1111
      %vm1113 = vcmask 916480
      %v1114 = vsel %vm1113, %v1106, %v1108
      %v1115 = vsel %vm1113, %v1108, %v1110
      %v1116 = vsel %vm1113, %v1110, %v1112
      %1120 = vst [vmem:[#allocation3 + $0x120] sm:$0xff] %v1114
      %1121 = vst [vmem:[#allocation3 + $0x128] sm:$0xff] %v1115
      %1122 = vst [vmem:[#allocation3 + $0x130] sm:$0xff] %v1116
      %v1123 = vld [vmem:[#allocation2 + $0x4] sm:$0xff]
      %v1124 = vld [vmem:[#allocation2 + $0xc] sm:$0xff]
      %1127 = vst [vmem:[#allocation1] ss:$2 sm:$0xff] %v1123
      %s1128 = scalar_lea.vmem [#allocation1], 16
      %1129 = vst [vmem:[%s1128] ss:$2 sm:$0xff] %v1124
      %v1130 = vld.sshfl [vmem:[#allocation1] sm:$0xff pattern:$0x75316420]
      %v1131 = vld.sshfl [vmem:[#allocation1 + $0x8] sm:$0xff pattern:$0x75316420]
      %v1132 = vld.sshfl [vmem:[#allocation1 + $0x10] sm:$0xff pattern:$0x75316420]
      %v1133 = vld.sshfl [vmem:[#allocation1 + $0x18] sm:$0xff pattern:$0x75316420]
      %1134 = vrot.lane.b32.xlu0 %v1130, 106
      %v1135 = vpop.permute.xlu0 %1134
      %1136 = vrot.lane.b32.xlu0 %v1131, 106
      %v1137 = vpop.permute.xlu0 %1136
      %1138 = vrot.lane.b32.xlu0 %v1132, 106
      %v1139 = vpop.permute.xlu0 %1138
      %1140 = vrot.lane.b32.xlu0 %v1133, 106
      %v1141 = vpop.permute.xlu0 %1140
      %v1142 = vsel %vm402, %v1135, %v1137
      %v1143 = vsel %vm402, %v1137, %v1139
      %v1144 = vsel %vm402, %v1139, %v1141
      %1148 = vst [vmem:[#allocation3 + $0x138] sm:$0xf] %v1142
      %1149 = vst [vmem:[#allocation3 + $0x140] sm:$0xf] %v1143
      %1150 = vst [vmem:[#allocation3 + $0x148] sm:$0xf] %v1144
      %v1151 = vld [vmem:[%s1] sm:$0xff]
      %v1152 = vld [vmem:[%s1 + $0x8] sm:$0xff]
      %v1153 = vld [vmem:[%s1 + $0x10] sm:$0xff]
      %v1154 = vld [vmem:[%s1 + $0x18] sm:$0xff]
      %v1155 = vld [vmem:[%s1 + $0x20] sm:$0x1f]
      %v1156 = vld [vmem:[#allocation3] sm:$0xff]
      %v1157 = vld [vmem:[#allocation3 + $0x8] sm:$0xff]
      %v1158 = vld [vmem:[#allocation3 + $0x10] sm:$0xff]
      %v1159 = vld [vmem:[#allocation3 + $0x18] sm:$0xff]
      %v1160 = vld [vmem:[#allocation3 + $0x20] sm:$0xff]
      %v1161 = vld [vmem:[#allocation3 + $0x28] sm:$0xff]
      %v1162 = vld [vmem:[#allocation3 + $0x30] sm:$0xff]
      %v1163 = vld [vmem:[#allocation3 + $0x38] sm:$0xff]
      %v1164 = vld [vmem:[#allocation3 + $0x40] sm:$0xff]
      %v1165 = vld [vmem:[#allocation3 + $0x48] sm:$0xff]
      %v1166 = vld [vmem:[#allocation3 + $0x50] sm:$0xff]
      %v1167 = vld [vmem:[#allocation3 + $0x58] sm:$0xff]
      %v1168 = vld [vmem:[#allocation3 + $0x60] sm:$0xff]
      %v1169 = vld [vmem:[#allocation3 + $0x68] sm:$0xff]
      %v1170 = vld [vmem:[#allocation3 + $0x70] sm:$0xff]
      %v1171 = vld [vmem:[#allocation3 + $0x78] sm:$0xff]
      %v1172 = vld [vmem:[#allocation3 + $0x80] sm:$0xff]
      %v1173 = vld [vmem:[#allocation3 + $0x88] sm:$0xff]
      %v1174 = vld [vmem:[#allocation3 + $0x90] sm:$0xff]
      %v1175 = vld [vmem:[#allocation3 + $0x98] sm:$0xff]
      %v1176 = vld [vmem:[#allocation3 + $0xa0] sm:$0xff]
      %v1177 = vld [vmem:[#allocation3 + $0xa8] sm:$0xff]
      %v1178 = vld [vmem:[#allocation3 + $0xb0] sm:$0xff]
      %v1179 = vld [vmem:[#allocation3 + $0xb8] sm:$0xff]
      %v1180 = vld [vmem:[#allocation3 + $0xc0] sm:$0xff]
      %v1181 = vld [vmem:[#allocation3 + $0xc8] sm:$0xff]
      %v1182 = vld [vmem:[#allocation3 + $0xd0] sm:$0xff]
      %v1183 = vld [vmem:[#allocation3 + $0xd8] sm:$0xff]
      %v1184 = vld [vmem:[#allocation3 + $0xe0] sm:$0xff]
      %v1185 = vld [vmem:[#allocation3 + $0xe8] sm:$0xff]
      %v1186 = vld [vmem:[#allocation3 + $0xf0] sm:$0xff]
      %v1187 = vld [vmem:[#allocation3 + $0xf8] sm:$0xff]
      %v1188 = vld [vmem:[#allocation3 + $0x100] sm:$0xff]
      %v1189 = vld [vmem:[#allocation3 + $0x108] sm:$0xff]
      %v1190 = vld [vmem:[#allocation3 + $0x110] sm:$0xff]
      %v1191 = vld [vmem:[#allocation3 + $0x118] sm:$0xff]
      %v1192 = vld [vmem:[#allocation3 + $0x120] sm:$0xff]
      %v1193 = vld [vmem:[#allocation3 + $0x128] sm:$0xff]
      %v1194 = vld [vmem:[#allocation3 + $0x130] sm:$0xff]
      %v1195 = vld [vmem:[#allocation3 + $0x138] sm:$0xff]
      %v1196 = vld [vmem:[#allocation3 + $0x140] sm:$0xff]
      %v1197 = vld [vmem:[#allocation3 + $0x148] sm:$0xff]
      %v1198 = vld [vmem:[#allocation3 + $0x150] sm:$0xff]
      %v1199 = vld [vmem:[#allocation3 + $0x158] sm:$0xff]
      %v1200 = vld [vmem:[#allocation3 + $0x160] sm:$0xff]
      %v1201 = vld [vmem:[#allocation3 + $0x168] sm:$0xff]
      %v1202 = vld [vmem:[#allocation3 + $0x170] sm:$0xff]
      %v1203 = vld [vmem:[#allocation3 + $0x178] sm:$0xff]
      %v1204 = vld [vmem:[%s2] sm:$0xff]
      %v1205 = vld [vmem:[%s2 + $0x8] sm:$0xff]
      %v1206 = vld [vmem:[%s2 + $0x10] sm:$0xff]
      %v1207 = vld [vmem:[%s2 + $0x18] sm:$0xff]
      %v1208 = vld [vmem:[%s2 + $0x20] sm:$0x1f]
      %1210 = vset.pattern.permute.xlu0 0
      %1211 = vperm.xlu0 %1210, %v1204
      %v1212 = vpop.permute.xlu0 %1211
      %1215 = vset.pattern.permute.xlu0 0
      %1216 = vperm.xlu0 %1215, %v1205
      %v1217 = vpop.permute.xlu0 %1216
      %1220 = vset.pattern.permute.xlu0 0
      %1221 = vperm.xlu0 %1220, %v1206
      %v1222 = vpop.permute.xlu0 %1221
      %1225 = vset.pattern.permute.xlu0 0
      %1226 = vperm.xlu0 %1225, %v1207
      %v1227 = vpop.permute.xlu0 %1226
      %1230 = vset.pattern.permute.xlu0 0
      %1231 = vperm.xlu0 %1230, %v1208
      %v1232 = vpop.permute.xlu0 %1231
      %1234 = vmatpush.msra.mxu0 %v1201
      %1235 = vmatpush.msra.mxu0 %v1198
      %1236 = vmatpush.msra.mxu0 %v1195
      %1237 = vmatpush.msra.mxu0 %v1192
      %1238 = vmatpush.msra.mxu0 %v1189
      %1239 = vmatpush.msra.mxu0 %v1186
      %1240 = vmatpush.msra.mxu0 %v1183
      %1241 = vmatpush.msra.mxu0 %v1180
      %1242 = vmatpush.msra.mxu0 %v1177
      %1243 = vmatpush.msra.mxu0 %v1174
      %1244 = vmatpush.msra.mxu0 %v1171
      %1245 = vmatpush.msra.mxu0 %v1168
      %1246 = vmatpush.msra.mxu0 %v1165
      %1247 = vmatpush.msra.mxu0 %v1162
      %1248 = vmatpush.msra.mxu0 %v1159
      %1249 = vmatpush.msra.mxu0 %v1156
      %1250 = vmatmul.f32.gmra.mxu0 %v1151
      %v1251 = vpop.f32.mrf.mxu0
      %v1252 = vadd.f32 %v1212, %v1251
      %1253 = vmatmul.f32.gmra.mxu0 %v1152
      %v1254 = vpop.f32.mrf.mxu0
      %v1255 = vadd.f32 %v1217, %v1254
      %1256 = vmatmul.f32.gmra.mxu0 %v1153
      %v1257 = vpop.f32.mrf.mxu0
      %v1258 = vadd.f32 %v1222, %v1257
      %1259 = vmatmul.f32.gmra.mxu0 %v1154
      %v1260 = vpop.f32.mrf.mxu0
      %v1261 = vadd.f32 %v1227, %v1260
      %1262 = vmatmul.f32.gmra.mxu0 %v1155
      %v1263 = vpop.f32.mrf.mxu0
      %v1264 = vadd.f32 %v1232, %v1263
      %1265 = vdwg.mxu0
      %1266 = vmatpush.msra.mxu0 %v1202
      %1267 = vmatpush.msra.mxu0 %v1199
      %1268 = vmatpush.msra.mxu0 %v1196
      %1269 = vmatpush.msra.mxu0 %v1193
      %1270 = vmatpush.msra.mxu0 %v1190
      %1271 = vmatpush.msra.mxu0 %v1187
      %1272 = vmatpush.msra.mxu0 %v1184
      %1273 = vmatpush.msra.mxu0 %v1181
      %1274 = vmatpush.msra.mxu0 %v1178
      %1275 = vmatpush.msra.mxu0 %v1175
      %1276 = vmatpush.msra.mxu0 %v1172
      %1277 = vmatpush.msra.mxu0 %v1169
      %1278 = vmatpush.msra.mxu0 %v1166
      %1279 = vmatpush.msra.mxu0 %v1163
      %1280 = vmatpush.msra.mxu0 %v1160
      %1281 = vmatpush.msra.mxu0 %v1157
      %1282 = vmatmul.f32.gmra.mxu0 %v1151
      %v1283 = vpop.f32.mrf.mxu0
      %v1284 = vadd.f32 %v1212, %v1283
      %1285 = vmatmul.f32.gmra.mxu0 %v1152
      %v1286 = vpop.f32.mrf.mxu0
      %v1287 = vadd.f32 %v1217, %v1286
      %1288 = vmatmul.f32.gmra.mxu0 %v1153
      %v1289 = vpop.f32.mrf.mxu0
      %v1290 = vadd.f32 %v1222, %v1289
      %1291 = vmatmul.f32.gmra.mxu0 %v1154
      %v1292 = vpop.f32.mrf.mxu0
      %v1293 = vadd.f32 %v1227, %v1292
      %1294 = vmatmul.f32.gmra.mxu0 %v1155
      %v1295 = vpop.f32.mrf.mxu0
      %v1296 = vadd.f32 %v1232, %v1295
      %1297 = vdwg.mxu0
      %1298 = vmatpush.msra.mxu0 %v1203
      %1299 = vmatpush.msra.mxu0 %v1200
      %1300 = vmatpush.msra.mxu0 %v1197
      %1301 = vmatpush.msra.mxu0 %v1194
      %1302 = vmatpush.msra.mxu0 %v1191
      %1303 = vmatpush.msra.mxu0 %v1188
      %1304 = vmatpush.msra.mxu0 %v1185
      %1305 = vmatpush.msra.mxu0 %v1182
      %1306 = vmatpush.msra.mxu0 %v1179
      %1307 = vmatpush.msra.mxu0 %v1176
      %1308 = vmatpush.msra.mxu0 %v1173
      %1309 = vmatpush.msra.mxu0 %v1170
      %1310 = vmatpush.msra.mxu0 %v1167
      %1311 = vmatpush.msra.mxu0 %v1164
      %1312 = vmatpush.msra.mxu0 %v1161
      %1313 = vmatpush.msra.mxu0 %v1158
      %1314 = vmatmul.f32.gmra.mxu0 %v1151
      %v1315 = vpop.f32.mrf.mxu0
      %v1316 = vadd.f32 %v1212, %v1315
      %1317 = vmatmul.f32.gmra.mxu0 %v1152
      %v1318 = vpop.f32.mrf.mxu0
      %v1319 = vadd.f32 %v1217, %v1318
      %1320 = vmatmul.f32.gmra.mxu0 %v1153
      %v1321 = vpop.f32.mrf.mxu0
      %v1322 = vadd.f32 %v1222, %v1321
      %1323 = vmatmul.f32.gmra.mxu0 %v1154
      %v1324 = vpop.f32.mrf.mxu0
      %v1325 = vadd.f32 %v1227, %v1324
      %1326 = vmatmul.f32.gmra.mxu0 %v1155
      %v1327 = vpop.f32.mrf.mxu0
      %v1328 = vadd.f32 %v1232, %v1327
      %1329 = vdwg.mxu0
      %1330 = vst [vmem:[%s170] sm:$0xff] %v1252
      %1331 = vst [vmem:[%s170 + $0x8] sm:$0xff] %v1284
      %1332 = vst [vmem:[%s170 + $0x10] sm:$0xff] %v1316
      %1333 = vst [vmem:[%s170 + $0x18] sm:$0xff] %v1255
      %1334 = vst [vmem:[%s170 + $0x20] sm:$0xff] %v1287
      %1335 = vst [vmem:[%s170 + $0x28] sm:$0xff] %v1319
      %1336 = vst [vmem:[%s170 + $0x30] sm:$0xff] %v1258
      %1337 = vst [vmem:[%s170 + $0x38] sm:$0xff] %v1290
      %1338 = vst [vmem:[%s170 + $0x40] sm:$0xff] %v1322
      %1339 = vst [vmem:[%s170 + $0x48] sm:$0xff] %v1261
      %1340 = vst [vmem:[%s170 + $0x50] sm:$0xff] %v1293
      %1341 = vst [vmem:[%s170 + $0x58] sm:$0xff] %v1325
      %1342 = vst [vmem:[%s170 + $0x60] sm:$0x1f] %v1264
      %1343 = vst [vmem:[%s170 + $0x68] sm:$0x1f] %v1296
      %1344 = vst [vmem:[%s170 + $0x70] sm:$0x1f] %v1328
      %v1345 = vxor.u32 %v1264, 2147483648
      %v1346 = vxor.u32 %v1296, 2147483648
      %v1347 = vxor.u32 %v1328, 2147483648
      %v1348 = vmul.f32 %v1345, 1.442695
      %v1349 = vpow.pop %v1348
      %v1350 = vmul.f32 %v1346, 1.442695
      %v1351 = vpow.pop %v1350
      %v1352 = vmul.f32 %v1347, 1.442695
      %v1353 = vpow.pop %v1352
      %v1354 = vadd.f32 %v1349, 1.0
      %v1355 = vadd.f32 %v1351, 1.0
      %v1356 = vadd.f32 %v1353, 1.0
      %v1357 = vrcp.pop %v1354
      %v1358 = vmul.f32 %v1354, %v1357
      %v1359 = vsub.f32 1.0, %v1358
      %v1360 = vmul.f32 %v1357, %v1359
      %v1361 = vadd.f32 %v1357, %v1360
      %vm1362 = vweird.f32 %v1354
      %vm1363 = vweird.f32 %v1357
      %vm1364 = vmor %vm1362, %vm1363
      %v1365 = vsel %vm1364, %v1357, %v1361
      %v1366 = vand.u32 2147483647, %v1354
      %vm1367 = vcmp.eq.f32.partialorder %v1366, 8.507059e+37
      %v1368 = vand.u32 %v1354, 2147483648
      %v1369 = vor.u32 1.1754944e-38, %v1368
      %v1370 = vsel %vm1367, %v1369, %v1365
      %v1371 = vmul.f32 1.0, %v1370
      %v1372 = vrcp.pop %v1355
      %v1373 = vmul.f32 %v1355, %v1372
      %v1374 = vsub.f32 1.0, %v1373
      %v1375 = vmul.f32 %v1372, %v1374
      %v1376 = vadd.f32 %v1372, %v1375
      %vm1377 = vweird.f32 %v1355
      %vm1378 = vweird.f32 %v1372
      %vm1379 = vmor %vm1377, %vm1378
      %v1380 = vsel %vm1379, %v1372, %v1376
      %v1381 = vand.u32 2147483647, %v1355
      %vm1382 = vcmp.eq.f32.partialorder %v1381, 8.507059e+37
      %v1383 = vand.u32 %v1355, 2147483648
      %v1384 = vor.u32 1.1754944e-38, %v1383
      %v1385 = vsel %vm1382, %v1384, %v1380
      %v1386 = vmul.f32 1.0, %v1385
      %v1387 = vrcp.pop %v1356
      %v1388 = vmul.f32 %v1356, %v1387
      %v1389 = vsub.f32 1.0, %v1388
      %v1390 = vmul.f32 %v1387, %v1389
      %v1391 = vadd.f32 %v1387, %v1390
      %vm1392 = vweird.f32 %v1356
      %vm1393 = vweird.f32 %v1387
      %vm1394 = vmor %vm1392, %vm1393
      %v1395 = vsel %vm1394, %v1387, %v1391
      %v1396 = vand.u32 2147483647, %v1356
      %vm1397 = vcmp.eq.f32.partialorder %v1396, 8.507059e+37
      %v1398 = vand.u32 %v1356, 2147483648
      %v1399 = vor.u32 1.1754944e-38, %v1398
      %v1400 = vsel %vm1397, %v1399, %v1395
      %v1401 = vmul.f32 1.0, %v1400
      %1405 = vst [vmem:[#allocation1] sm:$0xff] %v1371
      %1406 = vst [vmem:[#allocation1 + $0x9] sm:$0xff] %v1386
      %1407 = vst [vmem:[#allocation1 + $0x12] sm:$0xff] %v1401
      %s1408 = scalar_lea.vmem [#allocation1], 4
      %v1409 = vld [vmem:[%s1408] ss:$9 sm:$0xff]
      %v1411 = vlaneseq
      %vm1412 = vcmp.ge.s32.totalorder %v1411, 0
      %vm1413 = vcmp.lt.s32.totalorder %v1411, 384
      %vm1414 = vmand %vm1412, %vm1413
      %s1415 = scalar_lea.vmem %s170, 100
      %1416 = vst.msk [vmem:[%s1415] ss:$8 sm:$0x7] %vm1414, %v1409
      %1417 = vst.msk [vmem:[%s1415] ss:$8 sm:$0x0] %vm1414, %v1409
      %p1418 = scmp.lt.s32.totalorder %s14, 1
      %s1419 = scalar_select %p1418, %s14, 1
      %s1420 = smul.addr %s1419, 15
      %s1421 = smul.addr %s1420, 8
      %s1422 = scalar_lea.vmem %s3, %s1421
      // Predicated region
      $region33: #{block_forward.1} parent=31 // pred_check
        %p1423 = pneg %p100
      $region34: #{block_forward.1} parent=31 // pred_check_branch
        %1425 = sbr.rel (%p1423) target = $region36
      $region35: #{block_forward.1} parent=31 // pred_region
        _
      $region36: #{block_forward.1} parent=31 // pred_fallthru
        _
    $region32: #{block_forward.1} parent=5 // pred_fallthru
      _
    %p1426 = scmp.le.s32.totalorder 2, %s9
    // Predicated region
    $region37: #{block_forward.1} parent=5 // pred_check
      %p1427 = pneg %p1426
    $region38: #{block_forward.1} parent=5 // pred_check_branch
      %1429 = sbr.rel (%p1427) target = $region40
    $region39: #{block_forward.1} parent=5 // pred_region
      %s1430 = ssub.s32 %s9, 2
      // Predicated region
      $region41: #{block_forward.1} parent=39 // pred_check
        %p1431 = pneg %p106
      $region42: #{block_forward.1} parent=39 // pred_check_branch
        %1433 = sbr.rel (%p1431) target = $region44
      $region43: #{block_forward.1} parent=39 // pred_region
        %p1434 = scmp.lt.s32.totalorder %s15, 1
        %s1435 = scalar_select %p1434, %s15, 1
        %s1436 = smul.addr %s1435, 15
        %s1437 = smul.addr %s1436, 8
        %s1438 = scalar_lea.vmem %s3, %s1437
      $region44: #{block_forward.1} parent=39 // pred_fallthru
        _
    $region40: #{block_forward.1} parent=5 // pred_fallthru
      _
  $region6: #{block_forward.1} parent=0 // loop_footer
    %s13 = sadd.s32 1, %s9
  $region7: #{block_forward.1} parent=0 // loop_footer_branch
    %8 = sbr.rel target = $region3
  $region8: #{block_forward.1} parent=0 // loop_exit
    _

</llo_original>
